<compile_context>
chip_gen: v6e
topology: v6e:2x2x1
jax: 0.10.0
libtpu: 0.0.40
codegen_flags: <defaults>
</compile_context>

<pallas_src>
import functools
import math

import jax
import jax.numpy as jnp
from jax.experimental import pallas as pl
from jax.experimental.pallas import tpu as pltpu


def mha_kernel(x_ref, mask_ref, wqkv_ref, bqkv_ref, wo_ref, bo_ref,
               out_ref, attn_ref, law_ref, *, n_heads):
    H = n_heads
    _, _, S, D = x_ref.shape          # (3, 1, S, D)
    dk = D // H

    # ---- load inputs for this batch element -------------------------------
    x = x_ref[...][:, 0]              # (3, S, D) f32  (Q, K, V stacked)
    resid = x[0]                      # (S, D) f32 residual (original Q)

    # ---- fused Q/K/V projection, per-head layout directly ------------------
    # Replicate activations over the head axis (cheap, major-dim broadcast) so
    # the single batched matmul emits (3H, S, dk) with heads already major —
    # no minor-dim reshape / transpose / concat anywhere in the kernel.
    xb = x.astype(jnp.bfloat16)                               # (3, S, D)
    xb = jnp.broadcast_to(xb[:, None], (3, H, S, D)).reshape(3 * H, S, D)
    qkv = jnp.einsum('bsd,bdk->bsk', xb, wqkv_ref[...],
                     preferred_element_type=jnp.float32)      # (3H, S, dk) f32
    qkv = qkv + bqkv_ref[...]                                 # bias (3H, 1, dk)

    qh = qkv[0 * H:1 * H].astype(jnp.bfloat16)                # (H, S, dk)
    kh = qkv[1 * H:2 * H].astype(jnp.bfloat16)                # (H, S, dk)
    vh = qkv[2 * H:3 * H].astype(jnp.bfloat16)                # (H, S, dk)

    # ---- scores (scale already folded into Wq/bq on host) ------------------
    scores = jnp.einsum('hqd,hkd->hqk', qh, kh,
                        preferred_element_type=jnp.float32)   # (H, S, S) f32
    mask = mask_ref[0] != 0                                   # (S, S) True == masked
    scores = jnp.where(mask[None, :, :], jnp.float32(-1e9), scores)
    law_ref[0] = scores               # last_attention_weight: masked pre-softmax

    # ---- softmax (f32 on VPU/EUP; approx reciprocal -> EUP slot) ------------
    m = jnp.max(scores, axis=-1, keepdims=True)
    p = jnp.exp(scores - m)
    denom = jnp.sum(p, axis=-1, keepdims=True)
    attn = p * pl.reciprocal(denom, approx=True)              # (H, S, S) f32
    attn_ref[0] = attn
    # TODO(synk): training-mode dropout on `attn` not implemented (eval identity).

    # ---- context + output projection (per-head, then sum over heads) -------
    ctx = jnp.einsum('hqk,hkd->hqd', attn.astype(jnp.bfloat16), vh,
                     preferred_element_type=jnp.float32)      # (H, S, dk)
    parts = jnp.einsum('hqd,hde->hqe', ctx.astype(jnp.bfloat16), wo_ref[...],
                       preferred_element_type=jnp.float32)    # (H, S, D)
    out_ref[0] = jnp.sum(parts, axis=0) + bo_ref[...] + resid


def multihead_attention(Q, K, V, attn_mask, params, n_heads):
    """params = (Wq, bq, Wk, bk, Wv, bv, Wo, bo) in nn.Linear layout:
    W* are (out_features, in_features); biases shaped (1, d_model)."""
    Wq, bq, Wk, bk, Wv, bv, Wo, bo = params
    B, S, D = Q.shape
    H = n_heads
    assert D % H == 0
    dk = D // H
    scale = 1.0 / math.sqrt(dk)

    # ---- one-time host-side weight re-layout (hoisted out of the kernel) ----
    def w_heads(W, s=1.0):
        # (out=H*dk, in=D) -> y = x @ W.T ; store as (H, D, dk), scale folded.
        return (W * s).T.reshape(D, H, dk).transpose(1, 0, 2)

    def b_heads(b, s=1.0):
        return (b * s).reshape(H, 1, dk)

    w_qkv = jnp.concatenate(
        [w_heads(Wq, scale), w_heads(Wk), w_heads(Wv)], axis=0
    ).astype(jnp.bfloat16)                                    # (3H, D, dk)
    b_qkv = jnp.concatenate(
        [b_heads(bq, scale), b_heads(bk), b_heads(bv)], axis=0
    ).astype(jnp.float32)                                     # (3H, 1, dk)
    wo_h = Wo.T.reshape(H, dk, D).astype(jnp.bfloat16)        # (H, dk, D)
    bo_r = bo.reshape(1, D).astype(jnp.float32)               # (1, D)

    x_qkv = jnp.stack([Q, K, V], axis=0)                      # (3, B, S, D) f32
    mask_i = attn_mask.astype(jnp.int32)                      # (B, S, S)

    kernel = functools.partial(mha_kernel, n_heads=H)

    in_specs = [
        pl.BlockSpec((3, 1, S, D), lambda b: (0, b, 0, 0)),       # stacked Q/K/V
        pl.BlockSpec((1, S, S), lambda b: (b, 0, 0)),             # attn_mask
        pl.BlockSpec((3 * H, D, dk), lambda b: (0, 0, 0)),        # fused qkv weights
        pl.BlockSpec((3 * H, 1, dk), lambda b: (0, 0, 0)),        # fused qkv biases
        pl.BlockSpec((H, dk, D), lambda b: (0, 0, 0)),            # out-proj weights
        pl.BlockSpec((1, D), lambda b: (0, 0)),                   # out-proj bias
    ]
    out_shapes = (
        jax.ShapeDtypeStruct((B, S, D), jnp.float32),             # output + residual
        jax.ShapeDtypeStruct((B, H, S, S), jnp.float32),          # attn (post-softmax)
        jax.ShapeDtypeStruct((B, H, S, S), jnp.float32),          # last_attention_weight
    )
    out_specs = (
        pl.BlockSpec((1, S, D), lambda b: (b, 0, 0)),
        pl.BlockSpec((1, H, S, S), lambda b: (b, 0, 0, 0)),
        pl.BlockSpec((1, H, S, S), lambda b: (b, 0, 0, 0)),
    )

    return pl.pallas_call(
        kernel,
        out_shape=out_shapes,
        grid=(B,),
        in_specs=in_specs,
        out_specs=out_specs,
        compiler_params=pltpu.CompilerParams(
            dimension_semantics=("parallel",)),
    )(x_qkv, mask_i, w_qkv, b_qkv, wo_h, bo_r)


def init_params(key, d_model):
    ks = jax.random.split(key, 8)
    scale = 0.02
    Wq = scale * jax.random.normal(ks[0], (d_model, d_model), jnp.float32)
    bq = scale * jax.random.normal(ks[1], (1, d_model), jnp.float32)
    Wk = scale * jax.random.normal(ks[2], (d_model, d_model), jnp.float32)
    bk = scale * jax.random.normal(ks[3], (1, d_model), jnp.float32)
    Wv = scale * jax.random.normal(ks[4], (d_model, d_model), jnp.float32)
    bv = scale * jax.random.normal(ks[5], (1, d_model), jnp.float32)
    Wo = scale * jax.random.normal(ks[6], (d_model, d_model), jnp.float32)
    bo = scale * jax.random.normal(ks[7], (1, d_model), jnp.float32)
    return (Wq, bq, Wk, bk, Wv, bv, Wo, bo)


if __name__ == "__main__":
    # Small config consistent with the module: d_model=32, n_heads=4 -> d_k=8
    B, S, d_model, n_heads = 2, 8, 32, 4

    key = jax.random.PRNGKey(0)
    kq, kk, kv, kp = jax.random.split(key, 4)
    Q = jax.random.normal(kq, (B, S, d_model), jnp.float32)
    K = jax.random.normal(kk, (B, S, d_model), jnp.float32)
    V = jax.random.normal(kv, (B, S, d_model), jnp.float32)

    # Causal mask: True (masked) for future positions, same for every batch.
    row = jnp.arange(S)[:, None]
    col = jnp.arange(S)[None, :]
    attn_mask = jnp.broadcast_to(col > row, (B, S, S))

    params = init_params(kp, d_model)

    out, attn, last_attention_weight = multihead_attention(
        Q, K, V, attn_mask, params, n_heads)
    jax.block_until_ready((out, attn, last_attention_weight))

    assert out.shape == (B, S, d_model)
    assert attn.shape == (B, n_heads, S, S)
    assert last_attention_weight.shape == (B, n_heads, S, S)
    assert bool(jnp.all(jnp.isfinite(out)))
    assert bool(jnp.all(jnp.isfinite(attn)))
    print("KERNEL_OK")
</pallas_src>

<mosaic_0001>
module attributes {stable_mosaic.version = 11 : i64} {
  func.func @mha_kernel(%arg0: i32, %arg1: memref<3x1x8x32xf32, #tpu.memory_space<vmem>>, %arg2: memref<1x8x8xi32, #tpu.memory_space<vmem>>, %arg3: memref<12x32x8xbf16, #tpu.memory_space<vmem>>, %arg4: memref<12x1x8xf32, #tpu.memory_space<vmem>>, %arg5: memref<4x8x32xbf16, #tpu.memory_space<vmem>>, %arg6: memref<1x32xf32, #tpu.memory_space<vmem>>, %arg7: memref<1x8x32xf32, #tpu.memory_space<vmem>>, %arg8: memref<1x4x8x8xf32, #tpu.memory_space<vmem>>, %arg9: memref<1x4x8x8xf32, #tpu.memory_space<vmem>>) attributes {dimension_semantics = [#tpu.dimension_semantics<parallel>], iteration_bounds = array<i64: 2>, scalar_prefetch = 0 : i64, scratch_operands = 0 : i64, tpu.core_type = #tpu.core_type<tc>, window_params = [{transform_indices = @transform_0, window_bounds = array<i64: 3, 1, 8, 32>}, {transform_indices = @transform_1, window_bounds = array<i64: 1, 8, 8>}, {pipeline_mode = #tpu.pipeline_mode<synchronous>, transform_indices = @transform_2, window_bounds = array<i64: 12, 32, 8>}, {pipeline_mode = #tpu.pipeline_mode<synchronous>, transform_indices = @transform_3, window_bounds = array<i64: 12, 1, 8>}, {pipeline_mode = #tpu.pipeline_mode<synchronous>, transform_indices = @transform_4, window_bounds = array<i64: 4, 8, 32>}, {pipeline_mode = #tpu.pipeline_mode<synchronous>, transform_indices = @transform_5, window_bounds = array<i64: 1, 32>}, {transform_indices = @transform_6, window_bounds = array<i64: 1, 8, 32>}, {transform_indices = @transform_7, window_bounds = array<i64: 1, 4, 8, 8>}, {transform_indices = @transform_8, window_bounds = array<i64: 1, 4, 8, 8>}]} {
    %c0 = arith.constant 0 : index
    %c0_0 = arith.constant 0 : index
    %c0_1 = arith.constant 0 : index
    %c0_2 = arith.constant 0 : index
    %0 = vector.load %arg1[%c0, %c0_0, %c0_1, %c0_2] : memref<3x1x8x32xf32, #tpu.memory_space<vmem>>, vector<3x1x8x32xf32>
    %1 = vector.shape_cast %0 : vector<3x1x8x32xf32> to vector<3x8x32xf32>
    %2 = vector.extract_strided_slice %1 {offsets = [0, 0, 0], sizes = [1, 8, 32], strides = [1, 1, 1]} : vector<3x8x32xf32> to vector<1x8x32xf32>
    %3 = vector.shape_cast %2 : vector<1x8x32xf32> to vector<8x32xf32>
    %4 = arith.truncf %1 : vector<3x8x32xf32> to vector<3x8x32xbf16>
    %5 = vector.shape_cast %4 : vector<3x8x32xbf16> to vector<3x1x8x32xbf16>
    %6 = vector.shape_cast %5 : vector<3x1x8x32xbf16> to vector<3x1x8x32xbf16>
    %7 = vector.broadcast %6 : vector<3x1x8x32xbf16> to vector<3x4x8x32xbf16>
    %8 = vector.shape_cast %7 : vector<3x4x8x32xbf16> to vector<12x8x32xbf16>
    %c0_3 = arith.constant 0 : index
    %c0_4 = arith.constant 0 : index
    %c0_5 = arith.constant 0 : index
    %9 = vector.load %arg3[%c0_3, %c0_4, %c0_5] : memref<12x32x8xbf16, #tpu.memory_space<vmem>>, vector<12x32x8xbf16>
    "tpu.trace_start"() <{level = 10 : i32, message = "bsd,bdk->bsk"}> : () -> ()
    %cst = arith.constant dense<0.000000e+00> : vector<12x8x8xf32>
    %10 = tpu.matmul %8, %9, %cst {dimension_numbers = #tpu.dot_dimension_numbers<[2], [1], [1], [2], [0, 0, 0, 1, 1, 2], [0], [0]>} : vector<12x8x32xbf16>, vector<12x32x8xbf16>, vector<12x8x8xf32> -> vector<12x8x8xf32>
    "tpu.trace_stop"() : () -> ()
    %c0_6 = arith.constant 0 : index
    %c0_7 = arith.constant 0 : index
    %c0_8 = arith.constant 0 : index
    %11 = vector.load %arg4[%c0_6, %c0_7, %c0_8] : memref<12x1x8xf32, #tpu.memory_space<vmem>>, vector<12x1x8xf32>
    %12 = vector.broadcast %11 : vector<12x1x8xf32> to vector<12x8x8xf32>
    %13 = arith.addf %10, %12 : vector<12x8x8xf32>
    %14 = vector.extract_strided_slice %13 {offsets = [0, 0, 0], sizes = [4, 8, 8], strides = [1, 1, 1]} : vector<12x8x8xf32> to vector<4x8x8xf32>
    %15 = arith.truncf %14 : vector<4x8x8xf32> to vector<4x8x8xbf16>
    %16 = vector.extract_strided_slice %13 {offsets = [4, 0, 0], sizes = [4, 8, 8], strides = [1, 1, 1]} : vector<12x8x8xf32> to vector<4x8x8xf32>
    %17 = arith.truncf %16 : vector<4x8x8xf32> to vector<4x8x8xbf16>
    %18 = vector.extract_strided_slice %13 {offsets = [8, 0, 0], sizes = [4, 8, 8], strides = [1, 1, 1]} : vector<12x8x8xf32> to vector<4x8x8xf32>
    %19 = arith.truncf %18 : vector<4x8x8xf32> to vector<4x8x8xbf16>
    "tpu.trace_start"() <{level = 10 : i32, message = "hqd,hkd->hqk"}> : () -> ()
    %cst_9 = arith.constant dense<0.000000e+00> : vector<4x8x8xf32>
    %20 = tpu.matmul %15, %17, %cst_9 {dimension_numbers = #tpu.dot_dimension_numbers<[2], [2], [1], [1], [0, 0, 0, 1, 1, 1], [0], [0]>} : vector<4x8x8xbf16>, vector<4x8x8xbf16>, vector<4x8x8xf32> -> vector<4x8x8xf32>
    "tpu.trace_stop"() : () -> ()
    %c0_10 = arith.constant 0 : index
    %c0_11 = arith.constant 0 : index
    %c0_12 = arith.constant 0 : index
    %21 = vector.load %arg2[%c0_10, %c0_11, %c0_12] : memref<1x8x8xi32, #tpu.memory_space<vmem>>, vector<1x8x8xi32>
    %22 = vector.shape_cast %21 : vector<1x8x8xi32> to vector<8x8xi32>
    %c0_i32 = arith.constant 0 : i32
    %23 = vector.broadcast %c0_i32 : i32 to vector<8x8xi32>
    %24 = arith.cmpi ne, %22, %23 : vector<8x8xi32>
    %25 = vector.shape_cast %24 : vector<8x8xi1> to vector<1x8x8xi1>
    %cst_13 = arith.constant -1.000000e+09 : f32
    %26 = vector.shape_cast %25 : vector<1x8x8xi1> to vector<1x8x8xi1>
    %27 = vector.broadcast %26 : vector<1x8x8xi1> to vector<4x8x8xi1>
    %28 = vector.broadcast %cst_13 : f32 to vector<4x8x8xf32>
    %29 = arith.select %27, %28, %20 : vector<4x8x8xi1>, vector<4x8x8xf32>
    %c0_14 = arith.constant 0 : index
    %c0_15 = arith.constant 0 : index
    %c0_16 = arith.constant 0 : index
    %c0_17 = arith.constant 0 : index
    %30 = vector.load %arg9[%c0_14, %c0_15, %c0_16, %c0_17] : memref<1x4x8x8xf32, #tpu.memory_space<vmem>>, vector<1x4x8x8xf32>
    %31 = vector.shape_cast %30 : vector<1x4x8x8xf32> to vector<4x8x8xf32>
    %32 = vector.shape_cast %29 : vector<4x8x8xf32> to vector<1x4x8x8xf32>
    tpu.vector_store %arg9[%c0_14, %c0_15, %c0_16, %c0_17], %32 {strides = array<i32>} : memref<1x4x8x8xf32, #tpu.memory_space<vmem>>, vector<1x4x8x8xf32>,
    %cst_18 = arith.constant dense<0xFF800000> : vector<4x8xf32>
    %33 = vector.multi_reduction <maximumf>, %29, %cst_18 [2] : vector<4x8x8xf32> to vector<4x8xf32>
    %34 = vector.shape_cast %33 : vector<4x8xf32> to vector<4x8x1xf32>
    %35 = vector.broadcast %34 : vector<4x8x1xf32> to vector<4x8x8xf32>
    %36 = arith.subf %29, %35 : vector<4x8x8xf32>
    %37 = math.exp %36 : vector<4x8x8xf32>
    %cst_19 = arith.constant dense<0.000000e+00> : vector<4x8xf32>
    %38 = vector.multi_reduction <add>, %37, %cst_19 [2] : vector<4x8x8xf32> to vector<4x8xf32>
    %39 = vector.shape_cast %38 : vector<4x8xf32> to vector<4x8x1xf32>
    %40 = tpu.reciprocal %39 {approx = true} : vector<4x8x1xf32> -> vector<4x8x1xf32>
    %41 = vector.broadcast %40 : vector<4x8x1xf32> to vector<4x8x8xf32>
    %42 = arith.mulf %37, %41 : vector<4x8x8xf32>
    %c0_20 = arith.constant 0 : index
    %c0_21 = arith.constant 0 : index
    %c0_22 = arith.constant 0 : index
    %c0_23 = arith.constant 0 : index
    %43 = vector.load %arg8[%c0_20, %c0_21, %c0_22, %c0_23] : memref<1x4x8x8xf32, #tpu.memory_space<vmem>>, vector<1x4x8x8xf32>
    %44 = vector.shape_cast %43 : vector<1x4x8x8xf32> to vector<4x8x8xf32>
    %45 = vector.shape_cast %42 : vector<4x8x8xf32> to vector<1x4x8x8xf32>
    tpu.vector_store %arg8[%c0_20, %c0_21, %c0_22, %c0_23], %45 {strides = array<i32>} : memref<1x4x8x8xf32, #tpu.memory_space<vmem>>, vector<1x4x8x8xf32>,
    %46 = arith.truncf %42 : vector<4x8x8xf32> to vector<4x8x8xbf16>
    "tpu.trace_start"() <{level = 10 : i32, message = "hqk,hkd->hqd"}> : () -> ()
    %cst_24 = arith.constant dense<0.000000e+00> : vector<4x8x8xf32>
    %47 = tpu.matmul %46, %19, %cst_24 {dimension_numbers = #tpu.dot_dimension_numbers<[2], [1], [1], [2], [0, 0, 0, 1, 1, 2], [0], [0]>} : vector<4x8x8xbf16>, vector<4x8x8xbf16>, vector<4x8x8xf32> -> vector<4x8x8xf32>
    "tpu.trace_stop"() : () -> ()
    %48 = arith.truncf %47 : vector<4x8x8xf32> to vector<4x8x8xbf16>
    %c0_25 = arith.constant 0 : index
    %c0_26 = arith.constant 0 : index
    %c0_27 = arith.constant 0 : index
    %49 = vector.load %arg5[%c0_25, %c0_26, %c0_27] : memref<4x8x32xbf16, #tpu.memory_space<vmem>>, vector<4x8x32xbf16>
    "tpu.trace_start"() <{level = 10 : i32, message = "hqd,hde->hqe"}> : () -> ()
    %cst_28 = arith.constant dense<0.000000e+00> : vector<4x8x32xf32>
    %50 = tpu.matmul %48, %49, %cst_28 {dimension_numbers = #tpu.dot_dimension_numbers<[2], [1], [1], [2], [0, 0, 0, 1, 1, 2], [0], [0]>} : vector<4x8x8xbf16>, vector<4x8x32xbf16>, vector<4x8x32xf32> -> vector<4x8x32xf32>
    "tpu.trace_stop"() : () -> ()
    %cst_29 = arith.constant dense<0.000000e+00> : vector<8x32xf32>
    %51 = vector.multi_reduction <add>, %50, %cst_29 [0] : vector<4x8x32xf32> to vector<8x32xf32>
    %c0_30 = arith.constant 0 : index
    %c0_31 = arith.constant 0 : index
    %52 = vector.load %arg6[%c0_30, %c0_31] : memref<1x32xf32, #tpu.memory_space<vmem>>, vector<1x32xf32>
    %53 = vector.broadcast %52 : vector<1x32xf32> to vector<8x32xf32>
    %54 = arith.addf %51, %53 : vector<8x32xf32>
    %55 = arith.addf %54, %3 : vector<8x32xf32>
    %c0_32 = arith.constant 0 : index
    %c0_33 = arith.constant 0 : index
    %c0_34 = arith.constant 0 : index
    %56 = vector.load %arg7[%c0_32, %c0_33, %c0_34] : memref<1x8x32xf32, #tpu.memory_space<vmem>>, vector<1x8x32xf32>
    %57 = vector.shape_cast %56 : vector<1x8x32xf32> to vector<8x32xf32>
    %58 = vector.shape_cast %55 : vector<8x32xf32> to vector<1x8x32xf32>
    tpu.vector_store %arg7[%c0_32, %c0_33, %c0_34], %58 {strides = array<i32>} : memref<1x8x32xf32, #tpu.memory_space<vmem>>, vector<1x8x32xf32>,
    return
  }
  func.func @transform_0(%arg0: i32) -> (i32, i32, i32, i32) {
    %c0_i32 = arith.constant 0 : i32
    %c0_i32_0 = arith.constant 0 : i32
    %c0_i32_1 = arith.constant 0 : i32
    %c0_i32_2 = arith.constant 0 : i32
    return %c0_i32, %arg0, %c0_i32_0, %c0_i32_1 : i32, i32, i32, i32
  }
  func.func @transform_1(%arg0: i32) -> (i32, i32, i32) {
    %c0_i32 = arith.constant 0 : i32
    %c0_i32_0 = arith.constant 0 : i32
    %c0_i32_1 = arith.constant 0 : i32
    return %arg0, %c0_i32, %c0_i32_0 : i32, i32, i32
  }
  func.func @transform_2(%arg0: i32) -> (i32, i32, i32) {
    %c0_i32 = arith.constant 0 : i32
    %c0_i32_0 = arith.constant 0 : i32
    %c0_i32_1 = arith.constant 0 : i32
    %c0_i32_2 = arith.constant 0 : i32
    return %c0_i32, %c0_i32_0, %c0_i32_1 : i32, i32, i32
  }
  func.func @transform_3(%arg0: i32) -> (i32, i32, i32) {
    %c0_i32 = arith.constant 0 : i32
    %c0_i32_0 = arith.constant 0 : i32
    %c0_i32_1 = arith.constant 0 : i32
    %c0_i32_2 = arith.constant 0 : i32
    return %c0_i32, %c0_i32_0, %c0_i32_1 : i32, i32, i32
  }
  func.func @transform_4(%arg0: i32) -> (i32, i32, i32) {
    %c0_i32 = arith.constant 0 : i32
    %c0_i32_0 = arith.constant 0 : i32
    %c0_i32_1 = arith.constant 0 : i32
    %c0_i32_2 = arith.constant 0 : i32
    return %c0_i32, %c0_i32_0, %c0_i32_1 : i32, i32, i32
  }
  func.func @transform_5(%arg0: i32) -> (i32, i32) {
    %c0_i32 = arith.constant 0 : i32
    %c0_i32_0 = arith.constant 0 : i32
    %c0_i32_1 = arith.constant 0 : i32
    return %c0_i32, %c0_i32_0 : i32, i32
  }
  func.func @transform_6(%arg0: i32) -> (i32, i32, i32) {
    %c0_i32 = arith.constant 0 : i32
    %c0_i32_0 = arith.constant 0 : i32
    %c0_i32_1 = arith.constant 0 : i32
    return %arg0, %c0_i32, %c0_i32_0 : i32, i32, i32
  }
  func.func @transform_7(%arg0: i32) -> (i32, i32, i32, i32) {
    %c0_i32 = arith.constant 0 : i32
    %c0_i32_0 = arith.constant 0 : i32
    %c0_i32_1 = arith.constant 0 : i32
    %c0_i32_2 = arith.constant 0 : i32
    return %arg0, %c0_i32, %c0_i32_0, %c0_i32_1 : i32, i32, i32, i32
  }
  func.func @transform_8(%arg0: i32) -> (i32, i32, i32, i32) {
    %c0_i32 = arith.constant 0 : i32
    %c0_i32_0 = arith.constant 0 : i32
    %c0_i32_1 = arith.constant 0 : i32
    %c0_i32_2 = arith.constant 0 : i32
    return %arg0, %c0_i32, %c0_i32_0, %c0_i32_1 : i32, i32, i32, i32
  }
}

</mosaic_0001>

<llo_original>
// kernel: tpu_custom_call.1
$region0: #{tpu_custom_call.1}
  #allocation0 [shape = 'u32[]', space=smem, size = 0x4, offset = 0x4, fixed_abs, tag = 'smem constant byte address 0x4 - core index']
  #allocation1 [shape = 'u32[144,128]{1,0:T(1,128)}', space=vmem, size = 0x12000, scoped, tag = 'internal scratch']
  %s0 = inlined_call_operand.vmem [shape: f32[3,2,8,32], index: 0, kind: input, shape index: {}]
  %s1 = inlined_call_operand.vmem [shape: s32[2,8,8], index: 1, kind: input, shape index: {}]
  %s2 = inlined_call_operand.vmem [shape: bf16[12,32,8], index: 2, kind: input, shape index: {}]
  %s3 = inlined_call_operand.vmem [shape: f32[12,1,8], index: 3, kind: input, shape index: {}]
  %s4 = inlined_call_operand.vmem [shape: bf16[4,8,32], index: 4, kind: input, shape index: {}]
  %s5 = inlined_call_operand.vmem [shape: f32[1,32], index: 5, kind: input, shape index: {}]
  %s6 = inlined_call_operand.hbm [shape: f32[2,8,32], index: 6, kind: output, shape index: {0}]
  %s7 = inlined_call_operand.hbm [shape: f32[2,4,8,8], index: 7, kind: output, shape index: {1}]
  %s8 = inlined_call_operand.hbm [shape: f32[2,4,8,8], index: 8, kind: output, shape index: {2}]
  %9 = xla_tuple %s6, %s7, %s8
  %s10 = sld [smem:[#allocation0]]
  $region111: #{tpu_custom_call.1} parent=0
    _
  %s12 = ssub.s32 1, %s10
  %s13 = scalar_select 0, %s12, %s10
  $region1: #{tpu_custom_call.1} parent=0
    #allocation2 [shape = 'u8[24576]{0}', space=vmem, size = 0x6000, scoped, tag = 'input window, operand 0']
    #allocation3 [shape = 'u8[8192]{0}', space=vmem, size = 0x2000, scoped, tag = 'output window, operand 0']
    #allocation4 [shape = 's32[2]{0}', space=sflag, size = 0x8, scoped, tag = 'scoped memory for tpu_custom_call.1']
    #allocation5 [shape = 'u8[32768]{0}', space=vmem, size = 0x8000, scoped, tag = 'output window, operand 1']
    #allocation6 [shape = 's32[2]{0}', space=sflag, size = 0x8, scoped, tag = 'scoped memory for tpu_custom_call.1']
    #allocation7 [shape = 'u8[32768]{0}', space=vmem, size = 0x8000, scoped, tag = 'output window, operand 2']
    %14 = vsyncpa [#allocation4], 0
    %s15 = scalar_lea.sflag [#allocation4], 1
    %16 = vsyncpa %s15, 0
    %17 = vsyncpa [#allocation6], 0
    %s18 = scalar_lea.sflag [#allocation6], 1
    %19 = vsyncpa %s18, 0
    loop: start=0, step=1, limit=4
    $region2: #{tpu_custom_call.1} parent=1 // loop_pre_header
      _
    $region3: #{tpu_custom_call.1} parent=1 // loop_header
      %s21 = sphi 0, %s25
      %p22 = scmp.ge.s32.totalorder %s21, 4
      %s31 = sphi 0, %s33
      %s34 = sphi 0, %s31
      %s35 = sphi 0, %s34
      %s51 = sphi 0, %s35
      %s57 = sphi 0, %s59
      %s60 = sphi 0, %s57
      %s61 = sphi 0, %s60
      %s77 = sphi 0, %s61
      %s81 = sphi 0, %s81
      %s83 = sphi 0, %s81
      %s84 = sphi 0, %s83
      %s98 = sphi 0, %s84
      %s102 = sphi 0, %s102
      %s104 = sphi 0, %s102
      %s105 = sphi 0, %s104
      %s119 = sphi 0, %s105
      %s123 = sphi 0, %s123
      %s125 = sphi 0, %s123
      %s126 = sphi 0, %s125
      %s140 = sphi 0, %s126
      %s144 = sphi 0, %s144
      %s146 = sphi 0, %s144
      %s147 = sphi 0, %s146
      %s161 = sphi 0, %s147
      %s167 = sphi 0, %s169
      %s170 = sphi 0, %s167
      %s171 = sphi 0, %s170
      %s187 = sphi 0, %s171
      %s193 = sphi 0, %s195
      %s196 = sphi 0, %s193
      %s197 = sphi 0, %s196
      %s213 = sphi 0, %s197
      %s219 = sphi 0, %s221
      %s222 = sphi 0, %s219
      %s223 = sphi 0, %s222
      %s239 = sphi 0, %s223
    $region4: #{tpu_custom_call.1} parent=1 // loop_header_branch
      %24 = sbr.rel (%p22) target = $region8
    $region5: #{tpu_custom_call.1} parent=1 // loop_body
      %s26 = ssub.s32 %s21, 1
      %s27 = ssub.s32 %s21, 2
      %s28 = sadd.s32 %s21, 1
      %s29 = ssub.s32 %s21, %s28
      %p30 = scmp.eq.s32.totalorder %s29, 0
      %s32 = sadd.s32 %s31, 1
      %s33 = scalar_select %p30, %s31, %s32
      %p36 = pneg %p30
      %p37 = scmp.eq.s32.totalorder %s21, 1
      %p38 = por %p36, %p37
      %p39 = scmp.ne.s32.totalorder %s31, %s34
      %p40 = scmp.eq.s32.totalorder %s21, 0
      %p41 = por %p39, %p40
      %p42 = scmp.ne.s32.totalorder %s31, %s34
      %p43 = scmp.eq.s32.totalorder %s26, 1
      %p44 = por %p42, %p43
      %p45 = scmp.ne.s32.totalorder %s34, %s35
      %p46 = scmp.eq.s32.totalorder %s26, 0
      %p47 = por %p45, %p46
      %p48 = scmp.ne.s32.totalorder %s34, %s35
      %p49 = scmp.eq.s32.totalorder %s27, 1
      %p50 = por %p48, %p49
      %p52 = scmp.ne.s32.totalorder %s35, %s51
      %p53 = scmp.eq.s32.totalorder %s27, 0
      %p54 = por %p52, %p53
      %s55 = ssub.s32 %s21, %s28
      %p56 = scmp.eq.s32.totalorder %s55, 0
      %s58 = sadd.s32 %s57, 1
      %s59 = scalar_select %p56, %s57, %s58
      %p62 = pneg %p56
      %p63 = scmp.eq.s32.totalorder %s21, 1
      %p64 = por %p62, %p63
      %p65 = scmp.ne.s32.totalorder %s57, %s60
      %p66 = scmp.eq.s32.totalorder %s21, 0
      %p67 = por %p65, %p66
      %p68 = scmp.ne.s32.totalorder %s57, %s60
      %p69 = scmp.eq.s32.totalorder %s26, 1
      %p70 = por %p68, %p69
      %p71 = scmp.ne.s32.totalorder %s60, %s61
      %p72 = scmp.eq.s32.totalorder %s26, 0
      %p73 = por %p71, %p72
      %p74 = scmp.ne.s32.totalorder %s60, %s61
      %p75 = scmp.eq.s32.totalorder %s27, 1
      %p76 = por %p74, %p75
      %p78 = scmp.ne.s32.totalorder %s61, %s77
      %p79 = scmp.eq.s32.totalorder %s27, 0
      %p80 = por %p78, %p79
      %s82 = sadd.s32 %s81, 1
      %p85 = scmp.eq.s32.totalorder %s21, 1
      %p86 = scmp.ne.s32.totalorder %s81, %s83
      %p87 = scmp.eq.s32.totalorder %s21, 0
      %p88 = por %p86, %p87
      %p89 = scmp.ne.s32.totalorder %s81, %s83
      %p90 = scmp.eq.s32.totalorder %s26, 1
      %p91 = por %p89, %p90
      %p92 = scmp.ne.s32.totalorder %s83, %s84
      %p93 = scmp.eq.s32.totalorder %s26, 0
      %p94 = por %p92, %p93
      %p95 = scmp.ne.s32.totalorder %s83, %s84
      %p96 = scmp.eq.s32.totalorder %s27, 1
      %p97 = por %p95, %p96
      %p99 = scmp.ne.s32.totalorder %s84, %s98
      %p100 = scmp.eq.s32.totalorder %s27, 0
      %p101 = por %p99, %p100
      %s103 = sadd.s32 %s102, 1
      %p106 = scmp.eq.s32.totalorder %s21, 1
      %p107 = scmp.ne.s32.totalorder %s102, %s104
      %p108 = scmp.eq.s32.totalorder %s21, 0
      %p109 = por %p107, %p108
      %p110 = scmp.ne.s32.totalorder %s102, %s104
      %p111 = scmp.eq.s32.totalorder %s26, 1
      %p112 = por %p110, %p111
      %p113 = scmp.ne.s32.totalorder %s104, %s105
      %p114 = scmp.eq.s32.totalorder %s26, 0
      %p115 = por %p113, %p114
      %p116 = scmp.ne.s32.totalorder %s104, %s105
      %p117 = scmp.eq.s32.totalorder %s27, 1
      %p118 = por %p116, %p117
      %p120 = scmp.ne.s32.totalorder %s105, %s119
      %p121 = scmp.eq.s32.totalorder %s27, 0
      %p122 = por %p120, %p121
      %s124 = sadd.s32 %s123, 1
      %p127 = scmp.eq.s32.totalorder %s21, 1
      %p128 = scmp.ne.s32.totalorder %s123, %s125
      %p129 = scmp.eq.s32.totalorder %s21, 0
      %p130 = por %p128, %p129
      %p131 = scmp.ne.s32.totalorder %s123, %s125
      %p132 = scmp.eq.s32.totalorder %s26, 1
      %p133 = por %p131, %p132
      %p134 = scmp.ne.s32.totalorder %s125, %s126
      %p135 = scmp.eq.s32.totalorder %s26, 0
      %p136 = por %p134, %p135
      %p137 = scmp.ne.s32.totalorder %s125, %s126
      %p138 = scmp.eq.s32.totalorder %s27, 1
      %p139 = por %p137, %p138
      %p141 = scmp.ne.s32.totalorder %s126, %s140
      %p142 = scmp.eq.s32.totalorder %s27, 0
      %p143 = por %p141, %p142
      %s145 = sadd.s32 %s144, 1
      %p148 = scmp.eq.s32.totalorder %s21, 1
      %p149 = scmp.ne.s32.totalorder %s144, %s146
      %p150 = scmp.eq.s32.totalorder %s21, 0
      %p151 = por %p149, %p150
      %p152 = scmp.ne.s32.totalorder %s144, %s146
      %p153 = scmp.eq.s32.totalorder %s26, 1
      %p154 = por %p152, %p153
      %p155 = scmp.ne.s32.totalorder %s146, %s147
      %p156 = scmp.eq.s32.totalorder %s26, 0
      %p157 = por %p155, %p156
      %p158 = scmp.ne.s32.totalorder %s146, %s147
      %p159 = scmp.eq.s32.totalorder %s27, 1
      %p160 = por %p158, %p159
      %p162 = scmp.ne.s32.totalorder %s147, %s161
      %p163 = scmp.eq.s32.totalorder %s27, 0
      %p164 = por %p162, %p163
      %s165 = ssub.s32 %s21, %s28
      %p166 = scmp.eq.s32.totalorder %s165, 0
      %s168 = sadd.s32 %s167, 1
      %s169 = scalar_select %p166, %s167, %s168
      %p172 = pneg %p166
      %p173 = scmp.eq.s32.totalorder %s21, 1
      %p174 = por %p172, %p173
      %p175 = scmp.ne.s32.totalorder %s167, %s170
      %p176 = scmp.eq.s32.totalorder %s21, 0
      %p177 = por %p175, %p176
      %p178 = scmp.ne.s32.totalorder %s167, %s170
      %p179 = scmp.eq.s32.totalorder %s26, 1
      %p180 = por %p178, %p179
      %p181 = scmp.ne.s32.totalorder %s170, %s171
      %p182 = scmp.eq.s32.totalorder %s26, 0
      %p183 = por %p181, %p182
      %p184 = scmp.ne.s32.totalorder %s170, %s171
      %p185 = scmp.eq.s32.totalorder %s27, 1
      %p186 = por %p184, %p185
      %p188 = scmp.ne.s32.totalorder %s171, %s187
      %p189 = scmp.eq.s32.totalorder %s27, 0
      %p190 = por %p188, %p189
      %s191 = ssub.s32 %s21, %s28
      %p192 = scmp.eq.s32.totalorder %s191, 0
      %s194 = sadd.s32 %s193, 1
      %s195 = scalar_select %p192, %s193, %s194
      %p198 = pneg %p192
      %p199 = scmp.eq.s32.totalorder %s21, 1
      %p200 = por %p198, %p199
      %p201 = scmp.ne.s32.totalorder %s193, %s196
      %p202 = scmp.eq.s32.totalorder %s21, 0
      %p203 = por %p201, %p202
      %p204 = scmp.ne.s32.totalorder %s193, %s196
      %p205 = scmp.eq.s32.totalorder %s26, 1
      %p206 = por %p204, %p205
      %p207 = scmp.ne.s32.totalorder %s196, %s197
      %p208 = scmp.eq.s32.totalorder %s26, 0
      %p209 = por %p207, %p208
      %p210 = scmp.ne.s32.totalorder %s196, %s197
      %p211 = scmp.eq.s32.totalorder %s27, 1
      %p212 = por %p210, %p211
      %p214 = scmp.ne.s32.totalorder %s197, %s213
      %p215 = scmp.eq.s32.totalorder %s27, 0
      %p216 = por %p214, %p215
      %s217 = ssub.s32 %s21, %s28
      %p218 = scmp.eq.s32.totalorder %s217, 0
      %s220 = sadd.s32 %s219, 1
      %s221 = scalar_select %p218, %s219, %s220
      %p224 = pneg %p218
      %p225 = scmp.eq.s32.totalorder %s21, 1
      %p226 = por %p224, %p225
      %p227 = scmp.ne.s32.totalorder %s219, %s222
      %p228 = scmp.eq.s32.totalorder %s21, 0
      %p229 = por %p227, %p228
      %p230 = scmp.ne.s32.totalorder %s219, %s222
      %p231 = scmp.eq.s32.totalorder %s26, 1
      %p232 = por %p230, %p231
      %p233 = scmp.ne.s32.totalorder %s222, %s223
      %p234 = scmp.eq.s32.totalorder %s26, 0
      %p235 = por %p233, %p234
      %p236 = scmp.ne.s32.totalorder %s222, %s223
      %p237 = scmp.eq.s32.totalorder %s27, 1
      %p238 = por %p236, %p237
      %p240 = scmp.ne.s32.totalorder %s223, %s239
      %p241 = scmp.eq.s32.totalorder %s27, 0
      %p242 = por %p240, %p241
      %p243 = scmp.le.s32.totalorder 1, %s21
      %p244 = scmp.lt.s32.totalorder %s21, 3
      %p245 = pnand %p243, %p244
      %p246 = pneg %p245
      // Predicated region
      $region9: #{tpu_custom_call.1} parent=5 // pred_check
        _
      $region10: #{tpu_custom_call.1} parent=5 // pred_check_branch
        %248 = sbr.rel (%p245) target = $region12
      $region11: #{tpu_custom_call.1} parent=5 // pred_region
        %s249 = ssub.s32 %s21, 1
        // Predicated region
        $region13: #{tpu_custom_call.1} parent=11 // pred_check
          %p250 = pneg %p94
        $region14: #{tpu_custom_call.1} parent=11 // pred_check_branch
          %252 = sbr.rel (%p250) target = $region16
        $region15: #{tpu_custom_call.1} parent=11 // pred_region
          _
        $region16: #{tpu_custom_call.1} parent=11 // pred_fallthru
          _
        // Predicated region
        $region17: #{tpu_custom_call.1} parent=11 // pred_check
          %p253 = pneg %p115
        $region18: #{tpu_custom_call.1} parent=11 // pred_check_branch
          %255 = sbr.rel (%p253) target = $region20
        $region19: #{tpu_custom_call.1} parent=11 // pred_region
          _
        $region20: #{tpu_custom_call.1} parent=11 // pred_fallthru
          _
        // Predicated region
        $region21: #{tpu_custom_call.1} parent=11 // pred_check
          %p256 = pneg %p136
        $region22: #{tpu_custom_call.1} parent=11 // pred_check_branch
          %258 = sbr.rel (%p256) target = $region24
        $region23: #{tpu_custom_call.1} parent=11 // pred_region
          _
        $region24: #{tpu_custom_call.1} parent=11 // pred_fallthru
          _
        // Predicated region
        $region25: #{tpu_custom_call.1} parent=11 // pred_check
          %p259 = pneg %p157
        $region26: #{tpu_custom_call.1} parent=11 // pred_check_branch
          %261 = sbr.rel (%p259) target = $region28
        $region27: #{tpu_custom_call.1} parent=11 // pred_region
          _
        $region28: #{tpu_custom_call.1} parent=11 // pred_fallthru
          _
      $region12: #{tpu_custom_call.1} parent=5 // pred_fallthru
        _
      %p262 = scmp.lt.s32.totalorder %s21, 2
      // Predicated region
      $region29: #{tpu_custom_call.1} parent=5 // pred_check
        %p263 = pneg %p262
      $region30: #{tpu_custom_call.1} parent=5 // pred_check_branch
        %265 = sbr.rel (%p263) target = $region32
      $region31: #{tpu_custom_call.1} parent=5 // pred_region
        // Predicated region
        $region33: #{tpu_custom_call.1} parent=31 // pred_check
          %p266 = pneg %p41
        $region34: #{tpu_custom_call.1} parent=31 // pred_check_branch
          %268 = sbr.rel (%p266) target = $region36
        $region35: #{tpu_custom_call.1} parent=31 // pred_region
          %s269 = sand.u32 %s31, 1
          %s270 = sand.u32 %s31, 1
          %s271 = smul.addr %s270, 24
          %s272 = scalar_lea.vmem [#allocation2], %s271
          %s273 = smul.addr %s21, 8
          %s274 = scalar_lea.vmem %s0, %s273
          // Predicated region
          $region37: #{tpu_custom_call.1} parent=35 // pred_check
            _
          $region38: #{tpu_custom_call.1} parent=35 // pred_check_branch
            %276 = sbr.rel (0) target = $region40
          $region39: #{tpu_custom_call.1} parent=35 // pred_region
            // Predicated region
            $region41: #{tpu_custom_call.1} parent=39 // pred_check
              _
            $region42: #{tpu_custom_call.1} parent=39 // pred_check_branch
              %278 = sbr.rel (0) target = $region44
            $region43: #{tpu_custom_call.1} parent=39 // pred_region
              // Predicated region
              $region56: #{tpu_custom_call.1} parent=43 // pred_check
                _
              $region57: #{tpu_custom_call.1} parent=43 // pred_check_branch
                %298 = sbr.rel (0) target = $region59
              $region58: #{tpu_custom_call.1} parent=43 // pred_region
                loop: start=0, step=1, limit=1
                $region60: #{tpu_custom_call.1} parent=58 // loop_pre_header
                  _
                $region61: #{tpu_custom_call.1} parent=58 // loop_header
                  %s300 = sphi 0, %s304
                  %p301 = scmp.ge.s32.totalorder %s300, 1
                  %s305 = sphi %s274, %s274
                  %s306 = sphi %s272, %s272
                $region62: #{tpu_custom_call.1} parent=58 // loop_header_branch
                  %303 = sbr.rel (%p301) target = $region66
                $region63: #{tpu_custom_call.1} parent=58 // loop_body
                  %v307 = vld [vmem:[%s305] sm:$0xff]
                  %308 = vst [vmem:[%s306] sm:$0xff] %v307
                  %v309 = vld [vmem:[%s305 + $0x10] sm:$0xff]
                  %310 = vst [vmem:[%s306 + $0x8] sm:$0xff] %v309
                  %v311 = vld [vmem:[%s305 + $0x20] sm:$0xff]
                  %312 = vst [vmem:[%s306 + $0x10] sm:$0xff] %v311
                $region64: #{tpu_custom_call.1} parent=58 // loop_footer
                  %s304 = sadd.s32 1, %s300
                $region65: #{tpu_custom_call.1} parent=58 // loop_footer_branch
                  %299 = sbr.rel target = $region61
                $region66: #{tpu_custom_call.1} parent=58 // loop_exit
                  _
              $region59: #{tpu_custom_call.1} parent=43 // pred_fallthru
                _
              // Predicated region
              $region67: #{tpu_custom_call.1} parent=43 // pred_check
                _
              $region68: #{tpu_custom_call.1} parent=43 // pred_check_branch
                %314 = sbr.rel target = $region70
              $region69: #{tpu_custom_call.1} parent=43 // pred_region
                _
              $region70: #{tpu_custom_call.1} parent=43 // pred_fallthru
                _
            $region44: #{tpu_custom_call.1} parent=39 // pred_fallthru
              _
            // Predicated region
            $region45: #{tpu_custom_call.1} parent=39 // pred_check
              _
            $region46: #{tpu_custom_call.1} parent=39 // pred_check_branch
              %280 = sbr.rel target = $region48
            $region47: #{tpu_custom_call.1} parent=39 // pred_region
              %s282 = ssub.s32 256, 1
              loop: start=0, step=1, limit=1
              $region49: #{tpu_custom_call.1} parent=47 // loop_pre_header
                _
              $region50: #{tpu_custom_call.1} parent=47 // loop_header
                %s284 = sphi 0, %s288
                %p285 = scmp.ge.s32.totalorder %s284, 1
                %s289 = sphi %s274, %s274
                %s290 = sphi %s272, %s272
              $region51: #{tpu_custom_call.1} parent=47 // loop_header_branch
                %287 = sbr.rel (%p285) target = $region55
              $region52: #{tpu_custom_call.1} parent=47 // loop_body
                %v291 = vld [vmem:[%s289] sm:%s282]
                %292 = vst [vmem:[%s290] sm:%s282] %v291
                %v293 = vld [vmem:[%s289 + $0x10] sm:%s282]
                %294 = vst [vmem:[%s290 + $0x8] sm:%s282] %v293
                %v295 = vld [vmem:[%s289 + $0x20] sm:%s282]
                %296 = vst [vmem:[%s290 + $0x10] sm:%s282] %v295
              $region53: #{tpu_custom_call.1} parent=47 // loop_footer
                %s288 = sadd.s32 1, %s284
              $region54: #{tpu_custom_call.1} parent=47 // loop_footer_branch
                %283 = sbr.rel target = $region50
              $region55: #{tpu_custom_call.1} parent=47 // loop_exit
                _
            $region48: #{tpu_custom_call.1} parent=39 // pred_fallthru
              _
          $region40: #{tpu_custom_call.1} parent=35 // pred_fallthru
            _
          %315 = vnop
        $region36: #{tpu_custom_call.1} parent=31 // pred_fallthru
          _
        // Predicated region
        $region71: #{tpu_custom_call.1} parent=31 // pred_check
          %p316 = pneg %p67
        $region72: #{tpu_custom_call.1} parent=31 // pred_check_branch
          %318 = sbr.rel (%p316) target = $region74
        $region73: #{tpu_custom_call.1} parent=31 // pred_region
          %p319 = scmp.lt.s32.totalorder %s21, 1
          %s320 = scalar_select %p319, %s21, 1
          %s321 = smul.addr %s320, 8
          %s322 = scalar_lea.vmem %s1, %s321
        $region74: #{tpu_custom_call.1} parent=31 // pred_fallthru
          _
      $region32: #{tpu_custom_call.1} parent=5 // pred_fallthru
        _
      %p323 = scmp.le.s32.totalorder 1, %s21
      %p324 = scmp.lt.s32.totalorder %s21, 3
      %p325 = pnand %p323, %p324
      %p326 = pneg %p325
      // Predicated region
      $region75: #{tpu_custom_call.1} parent=5 // pred_check
        _
      $region76: #{tpu_custom_call.1} parent=5 // pred_check_branch
        %328 = sbr.rel (%p325) target = $region78
      $region77: #{tpu_custom_call.1} parent=5 // pred_region
        %s329 = ssub.s32 %s21, 1
        %s330 = sand.u32 %s34, 1
        %s331 = sand.u32 %s34, 1
        %s332 = smul.addr %s331, 24
        %s333 = scalar_lea.vmem [#allocation2], %s332
        // Predicated region
        $region79: #{tpu_custom_call.1} parent=77 // pred_check
          %p334 = pneg %p47
        $region80: #{tpu_custom_call.1} parent=77 // pred_check_branch
          %336 = sbr.rel (%p334) target = $region82
        $region81: #{tpu_custom_call.1} parent=77 // pred_region
          _
        $region82: #{tpu_custom_call.1} parent=77 // pred_fallthru
          _
        %s337 = sand.u32 %s34, 1
        %s338 = sand.u32 %s34, 1
        %s339 = smul.addr %s338, 24
        %s340 = scalar_lea.vmem [#allocation2], %s339
        %p341 = pneg %p47
        %p342 = pneg %p44
        %p343 = scmp.lt.s32.totalorder %s26, 1
        %s344 = scalar_select %p343, %s26, 1
        %s345 = smul.addr %s344, 8
        %s346 = scalar_lea.vmem %s1, %s345
        %p347 = pneg %p73
        %p348 = pneg %p70
        %p349 = pneg %p94
        %p350 = pneg %p91
        %p351 = pneg %p115
        %p352 = pneg %p112
        %p353 = pneg %p136
        %p354 = pneg %p133
        %p355 = pneg %p157
        %p356 = pneg %p154
        %p357 = pneg %p183
        %p358 = pneg %p180
        %s359 = sand.u32 %s170, 1
        %s360 = scalar_lea.sflag [#allocation4], %s359
        %s361 = sand.u32 %s170, 1
        %s362 = smul.addr %s361, 8
        %s363 = scalar_lea.vmem [#allocation3], %s362
        %p364 = pneg %p209
        %p365 = pneg %p206
        %s366 = sand.u32 %s26, 1
        %s367 = scalar_lea.sflag [#allocation6], %s366
        %s368 = sand.u32 %s196, 1
        %s369 = smul.addr %s368, 32
        %s370 = scalar_lea.vmem [#allocation5], %s369
        %p371 = pneg %p235
        %p372 = pneg %p232
        %s373 = sand.u32 %s26, 1
        %s374 = scalar_lea.sflag [#allocation6], %s373
        %s375 = sand.u32 %s222, 1
        %s376 = smul.addr %s375, 32
        %s377 = scalar_lea.vmem [#allocation7], %s376
        %p378 = scmp.lt.s32.totalorder %s26, 1
        %s379 = scalar_select %p378, %s26, 1
        %s380 = smul.addr %s379, 8
        %s381 = scalar_lea.vmem %s1, %s380
        %v383 = vld [vmem:[%s333] sm:$0xff]
        %v384 = vld [vmem:[%s333 + $0x8] sm:$0xff]
        %v385 = vld [vmem:[%s333 + $0x10] sm:$0xff]
        %v386 = vpack.c.bf16 %v383, %v383
        %v387 = vpack.c.bf16 %v384, %v384
        %v388 = vpack.c.bf16 %v385, %v385
        %v389 = vld [vmem:[%s2] sm:$0xf]
        %v390 = vld [vmem:[%s2 + $0x4] sm:$0xf]
        %v391 = vld [vmem:[%s2 + $0x8] sm:$0xf]
        %v392 = vld [vmem:[%s2 + $0xc] sm:$0xf]
        %v393 = vld [vmem:[%s2 + $0x10] sm:$0xf]
        %v394 = vld [vmem:[%s2 + $0x14] sm:$0xf]
        %v395 = vld [vmem:[%s2 + $0x18] sm:$0xf]
        %v396 = vld [vmem:[%s2 + $0x1c] sm:$0xf]
        %v397 = vld [vmem:[%s2 + $0x20] sm:$0xf]
        %v398 = vld [vmem:[%s2 + $0x24] sm:$0xf]
        %v399 = vld [vmem:[%s2 + $0x28] sm:$0xf]
        %v400 = vld [vmem:[%s2 + $0x2c] sm:$0xf]
        %v401 = vld [vmem:[%s2 + $0x30] sm:$0xf]
        %v402 = vld [vmem:[%s2 + $0x34] sm:$0xf]
        %v403 = vld [vmem:[%s2 + $0x38] sm:$0xf]
        %v404 = vld [vmem:[%s2 + $0x3c] sm:$0xf]
        %v405 = vld [vmem:[%s2 + $0x40] sm:$0xf]
        %v406 = vld [vmem:[%s2 + $0x44] sm:$0xf]
        %v407 = vld [vmem:[%s2 + $0x48] sm:$0xf]
        %v408 = vld [vmem:[%s2 + $0x4c] sm:$0xf]
        %v409 = vld [vmem:[%s2 + $0x50] sm:$0xf]
        %v410 = vld [vmem:[%s2 + $0x54] sm:$0xf]
        %v411 = vld [vmem:[%s2 + $0x58] sm:$0xf]
        %v412 = vld [vmem:[%s2 + $0x5c] sm:$0xf]
        %v413 = vld [vmem:[%s2 + $0x60] sm:$0xf]
        %v414 = vld [vmem:[%s2 + $0x64] sm:$0xf]
        %v415 = vld [vmem:[%s2 + $0x68] sm:$0xf]
        %v416 = vld [vmem:[%s2 + $0x6c] sm:$0xf]
        %v417 = vld [vmem:[%s2 + $0x70] sm:$0xf]
        %v418 = vld [vmem:[%s2 + $0x74] sm:$0xf]
        %v419 = vld [vmem:[%s2 + $0x78] sm:$0xf]
        %v420 = vld [vmem:[%s2 + $0x7c] sm:$0xf]
        %v421 = vld [vmem:[%s2 + $0x80] sm:$0xf]
        %v422 = vld [vmem:[%s2 + $0x84] sm:$0xf]
        %v423 = vld [vmem:[%s2 + $0x88] sm:$0xf]
        %v424 = vld [vmem:[%s2 + $0x8c] sm:$0xf]
        %v425 = vld [vmem:[%s2 + $0x90] sm:$0xf]
        %v426 = vld [vmem:[%s2 + $0x94] sm:$0xf]
        %v427 = vld [vmem:[%s2 + $0x98] sm:$0xf]
        %v428 = vld [vmem:[%s2 + $0x9c] sm:$0xf]
        %v429 = vld [vmem:[%s2 + $0xa0] sm:$0xf]
        %v430 = vld [vmem:[%s2 + $0xa4] sm:$0xf]
        %v431 = vld [vmem:[%s2 + $0xa8] sm:$0xf]
        %v432 = vld [vmem:[%s2 + $0xac] sm:$0xf]
        %v433 = vld [vmem:[%s2 + $0xb0] sm:$0xf]
        %v434 = vld [vmem:[%s2 + $0xb4] sm:$0xf]
        %v435 = vld [vmem:[%s2 + $0xb8] sm:$0xf]
        %v436 = vld [vmem:[%s2 + $0xbc] sm:$0xf]
        %v437 = vld [vmem:[%s3] sm:$0x1]
        %v438 = vld [vmem:[%s3 + $0x1] sm:$0x1]
        %v439 = vld [vmem:[%s3 + $0x2] sm:$0x1]
        %v440 = vld [vmem:[%s3 + $0x3] sm:$0x1]
        %v441 = vld [vmem:[%s3 + $0x4] sm:$0x1]
        %v442 = vld [vmem:[%s3 + $0x5] sm:$0x1]
        %v443 = vld [vmem:[%s3 + $0x6] sm:$0x1]
        %v444 = vld [vmem:[%s3 + $0x7] sm:$0x1]
        %v445 = vld [vmem:[%s3 + $0x8] sm:$0x1]
        %v446 = vld [vmem:[%s3 + $0x9] sm:$0x1]
        %v447 = vld [vmem:[%s3 + $0xa] sm:$0x1]
        %v448 = vld [vmem:[%s3 + $0xb] sm:$0x1]
        %v461 = vlaneseq
        %v462 = vshrl.u32 %v461, 7
        %v463 = vsub.s32 0, %v462
        %v464 = vrot.slane %v437, %v463
        %v465 = vlaneseq
        %v466 = vshrl.u32 %v465, 7
        %v467 = vsub.s32 0, %v466
        %v468 = vrot.slane %v438, %v467
        %v469 = vlaneseq
        %v470 = vshrl.u32 %v469, 7
        %v471 = vsub.s32 0, %v470
        %v472 = vrot.slane %v439, %v471
        %v473 = vlaneseq
        %v474 = vshrl.u32 %v473, 7
        %v475 = vsub.s32 0, %v474
        %v476 = vrot.slane %v440, %v475
        %v477 = vlaneseq
        %v478 = vshrl.u32 %v477, 7
        %v479 = vsub.s32 0, %v478
        %v480 = vrot.slane %v441, %v479
        %v481 = vlaneseq
        %v482 = vshrl.u32 %v481, 7
        %v483 = vsub.s32 0, %v482
        %v484 = vrot.slane %v442, %v483
        %v485 = vlaneseq
        %v486 = vshrl.u32 %v485, 7
        %v487 = vsub.s32 0, %v486
        %v488 = vrot.slane %v443, %v487
        %v489 = vlaneseq
        %v490 = vshrl.u32 %v489, 7
        %v491 = vsub.s32 0, %v490
        %v492 = vrot.slane %v444, %v491
        %v493 = vlaneseq
        %v494 = vshrl.u32 %v493, 7
        %v495 = vsub.s32 0, %v494
        %v496 = vrot.slane %v445, %v495
        %v497 = vlaneseq
        %v498 = vshrl.u32 %v497, 7
        %v499 = vsub.s32 0, %v498
        %v500 = vrot.slane %v446, %v499
        %v501 = vlaneseq
        %v502 = vshrl.u32 %v501, 7
        %v503 = vsub.s32 0, %v502
        %v504 = vrot.slane %v447, %v503
        %v505 = vlaneseq
        %v506 = vshrl.u32 %v505, 7
        %v507 = vsub.s32 0, %v506
        %v508 = vrot.slane %v448, %v507
        %v525 = vunpack.c.l.b16 %v389
        %v526 = vunpack.c.l.b16 %v390
        %v527 = vunpack.c.l.b16 %v391
        %v528 = vunpack.c.l.b16 %v392
        %v529 = vpack.c.b16 %v526, %v525
        %v530 = vpack.c.b16 %v528, %v527
        %vm533 = vcmask 261120
        %v535 = vsel %vm533, %v386, 0
        %537 = vmatprep.subr.bf16.mxu0 0
        %538 = vmatpush1.bf16.msra.mxu0 0
        %539 = vmatprep.subr.bf16.mxu0 0
        %540 = vmatpush1.bf16.msra.mxu0 0
        %541 = vmatprep.subr.bf16.mxu0 0
        %542 = vmatpush1.bf16.msra.mxu0 0
        %543 = vmatprep.subr.bf16.mxu0 0
        %544 = vmatpush1.bf16.msra.mxu0 0
        %545 = vmatprep.subr.bf16.mxu0 0
        %546 = vmatpush1.bf16.msra.mxu0 0
        %547 = vmatprep.subr.bf16.mxu0 0
        %548 = vmatpush1.bf16.msra.mxu0 0
        %549 = vmatprep.subr.bf16.mxu0 0
        %550 = vmatpush1.bf16.msra.mxu0 %v530
        %551 = vmatprep.subr.bf16.mxu0 0
        %552 = vmatpush1.bf16.msra.mxu0 %v529
        %553 = vmatprep.subr.bf16.mxu0 0
        %554 = vmatpush2.bf16.msra.mxu0 0
        %555 = vmatprep.subr.bf16.mxu0 0
        %556 = vmatpush2.bf16.msra.mxu0 0
        %557 = vmatprep.subr.bf16.mxu0 0
        %558 = vmatpush2.bf16.msra.mxu0 0
        %559 = vmatprep.subr.bf16.mxu0 0
        %560 = vmatpush2.bf16.msra.mxu0 0
        %561 = vmatprep.subr.bf16.mxu0 0
        %562 = vmatpush2.bf16.msra.mxu0 0
        %563 = vmatprep.subr.bf16.mxu0 0
        %564 = vmatpush2.bf16.msra.mxu0 0
        %565 = vmatprep.subr.bf16.mxu0 0
        %566 = vmatpush2.bf16.msra.mxu0 0
        %567 = vmatprep.subr.bf16.mxu0 0
        %568 = vmatpush2.bf16.msra.mxu0 0
        %569 = vmatprep.mubr.bf16.mxu0 0
        %570 = vmatmul.mubr.bf16.gmra.mxu0 %v535
        %v571 = vpop.f32.mrf.mxu0
        %v572 = vadd.f32 %v464, %v571
        %v573 = vpop.f32.mrf.mxu0
        %v574 = vpop.f32.mrf.mxu0
        %v575 = vpop.f32.mrf.mxu0
        %576 = vdwg.mxu0
        %v581 = vunpack.c.l.b16 %v393
        %v582 = vunpack.c.l.b16 %v394
        %v583 = vunpack.c.l.b16 %v395
        %v584 = vunpack.c.l.b16 %v396
        %v585 = vpack.c.b16 %v582, %v581
        %v586 = vpack.c.b16 %v584, %v583
        %589 = vmatprep.subr.bf16.mxu0 0
        %590 = vmatpush1.bf16.msra.mxu0 0
        %591 = vmatprep.subr.bf16.mxu0 0
        %592 = vmatpush1.bf16.msra.mxu0 0
        %593 = vmatprep.subr.bf16.mxu0 0
        %594 = vmatpush1.bf16.msra.mxu0 0
        %595 = vmatprep.subr.bf16.mxu0 0
        %596 = vmatpush1.bf16.msra.mxu0 0
        %597 = vmatprep.subr.bf16.mxu0 0
        %598 = vmatpush1.bf16.msra.mxu0 0
        %599 = vmatprep.subr.bf16.mxu0 0
        %600 = vmatpush1.bf16.msra.mxu0 0
        %601 = vmatprep.subr.bf16.mxu0 0
        %602 = vmatpush1.bf16.msra.mxu0 %v586
        %603 = vmatprep.subr.bf16.mxu0 0
        %604 = vmatpush1.bf16.msra.mxu0 %v585
        %605 = vmatprep.subr.bf16.mxu0 0
        %606 = vmatpush2.bf16.msra.mxu0 0
        %607 = vmatprep.subr.bf16.mxu0 0
        %608 = vmatpush2.bf16.msra.mxu0 0
        %609 = vmatprep.subr.bf16.mxu0 0
        %610 = vmatpush2.bf16.msra.mxu0 0
        %611 = vmatprep.subr.bf16.mxu0 0
        %612 = vmatpush2.bf16.msra.mxu0 0
        %613 = vmatprep.subr.bf16.mxu0 0
        %614 = vmatpush2.bf16.msra.mxu0 0
        %615 = vmatprep.subr.bf16.mxu0 0
        %616 = vmatpush2.bf16.msra.mxu0 0
        %617 = vmatprep.subr.bf16.mxu0 0
        %618 = vmatpush2.bf16.msra.mxu0 0
        %619 = vmatprep.subr.bf16.mxu0 0
        %620 = vmatpush2.bf16.msra.mxu0 0
        %621 = vmatprep.mubr.bf16.mxu0 0
        %622 = vmatmul.mubr.bf16.gmra.mxu0 %v535
        %v623 = vpop.f32.mrf.mxu0
        %v624 = vadd.f32 %v468, %v623
        %v625 = vpop.f32.mrf.mxu0
        %v626 = vpop.f32.mrf.mxu0
        %v627 = vpop.f32.mrf.mxu0
        %628 = vdwg.mxu0
        %v633 = vunpack.c.l.b16 %v397
        %v634 = vunpack.c.l.b16 %v398
        %v635 = vunpack.c.l.b16 %v399
        %v636 = vunpack.c.l.b16 %v400
        %v637 = vpack.c.b16 %v634, %v633
        %v638 = vpack.c.b16 %v636, %v635
        %641 = vmatprep.subr.bf16.mxu0 0
        %642 = vmatpush1.bf16.msra.mxu0 0
        %643 = vmatprep.subr.bf16.mxu0 0
        %644 = vmatpush1.bf16.msra.mxu0 0
        %645 = vmatprep.subr.bf16.mxu0 0
        %646 = vmatpush1.bf16.msra.mxu0 0
        %647 = vmatprep.subr.bf16.mxu0 0
        %648 = vmatpush1.bf16.msra.mxu0 0
        %649 = vmatprep.subr.bf16.mxu0 0
        %650 = vmatpush1.bf16.msra.mxu0 0
        %651 = vmatprep.subr.bf16.mxu0 0
        %652 = vmatpush1.bf16.msra.mxu0 0
        %653 = vmatprep.subr.bf16.mxu0 0
        %654 = vmatpush1.bf16.msra.mxu0 %v638
        %655 = vmatprep.subr.bf16.mxu0 0
        %656 = vmatpush1.bf16.msra.mxu0 %v637
        %657 = vmatprep.subr.bf16.mxu0 0
        %658 = vmatpush2.bf16.msra.mxu0 0
        %659 = vmatprep.subr.bf16.mxu0 0
        %660 = vmatpush2.bf16.msra.mxu0 0
        %661 = vmatprep.subr.bf16.mxu0 0
        %662 = vmatpush2.bf16.msra.mxu0 0
        %663 = vmatprep.subr.bf16.mxu0 0
        %664 = vmatpush2.bf16.msra.mxu0 0
        %665 = vmatprep.subr.bf16.mxu0 0
        %666 = vmatpush2.bf16.msra.mxu0 0
        %667 = vmatprep.subr.bf16.mxu0 0
        %668 = vmatpush2.bf16.msra.mxu0 0
        %669 = vmatprep.subr.bf16.mxu0 0
        %670 = vmatpush2.bf16.msra.mxu0 0
        %671 = vmatprep.subr.bf16.mxu0 0
        %672 = vmatpush2.bf16.msra.mxu0 0
        %673 = vmatprep.mubr.bf16.mxu0 0
        %674 = vmatmul.mubr.bf16.gmra.mxu0 %v535
        %v675 = vpop.f32.mrf.mxu0
        %v676 = vadd.f32 %v472, %v675
        %v677 = vpop.f32.mrf.mxu0
        %v678 = vpop.f32.mrf.mxu0
        %v679 = vpop.f32.mrf.mxu0
        %680 = vdwg.mxu0
        %v685 = vunpack.c.l.b16 %v401
        %v686 = vunpack.c.l.b16 %v402
        %v687 = vunpack.c.l.b16 %v403
        %v688 = vunpack.c.l.b16 %v404
        %v689 = vpack.c.b16 %v686, %v685
        %v690 = vpack.c.b16 %v688, %v687
        %693 = vmatprep.subr.bf16.mxu0 0
        %694 = vmatpush1.bf16.msra.mxu0 0
        %695 = vmatprep.subr.bf16.mxu0 0
        %696 = vmatpush1.bf16.msra.mxu0 0
        %697 = vmatprep.subr.bf16.mxu0 0
        %698 = vmatpush1.bf16.msra.mxu0 0
        %699 = vmatprep.subr.bf16.mxu0 0
        %700 = vmatpush1.bf16.msra.mxu0 0
        %701 = vmatprep.subr.bf16.mxu0 0
        %702 = vmatpush1.bf16.msra.mxu0 0
        %703 = vmatprep.subr.bf16.mxu0 0
        %704 = vmatpush1.bf16.msra.mxu0 0
        %705 = vmatprep.subr.bf16.mxu0 0
        %706 = vmatpush1.bf16.msra.mxu0 %v690
        %707 = vmatprep.subr.bf16.mxu0 0
        %708 = vmatpush1.bf16.msra.mxu0 %v689
        %709 = vmatprep.subr.bf16.mxu0 0
        %710 = vmatpush2.bf16.msra.mxu0 0
        %711 = vmatprep.subr.bf16.mxu0 0
        %712 = vmatpush2.bf16.msra.mxu0 0
        %713 = vmatprep.subr.bf16.mxu0 0
        %714 = vmatpush2.bf16.msra.mxu0 0
        %715 = vmatprep.subr.bf16.mxu0 0
        %716 = vmatpush2.bf16.msra.mxu0 0
        %717 = vmatprep.subr.bf16.mxu0 0
        %718 = vmatpush2.bf16.msra.mxu0 0
        %719 = vmatprep.subr.bf16.mxu0 0
        %720 = vmatpush2.bf16.msra.mxu0 0
        %721 = vmatprep.subr.bf16.mxu0 0
        %722 = vmatpush2.bf16.msra.mxu0 0
        %723 = vmatprep.subr.bf16.mxu0 0
        %724 = vmatpush2.bf16.msra.mxu0 0
        %725 = vmatprep.mubr.bf16.mxu0 0
        %726 = vmatmul.mubr.bf16.gmra.mxu0 %v535
        %v727 = vpop.f32.mrf.mxu0
        %v728 = vadd.f32 %v476, %v727
        %v729 = vpop.f32.mrf.mxu0
        %v730 = vpop.f32.mrf.mxu0
        %v731 = vpop.f32.mrf.mxu0
        %732 = vdwg.mxu0
        %v737 = vunpack.c.l.b16 %v405
        %v738 = vunpack.c.l.b16 %v406
        %v739 = vunpack.c.l.b16 %v407
        %v740 = vunpack.c.l.b16 %v408
        %v741 = vpack.c.b16 %v738, %v737
        %v742 = vpack.c.b16 %v740, %v739
        %v746 = vsel %vm533, %v387, 0
        %748 = vmatprep.subr.bf16.mxu0 0
        %749 = vmatpush1.bf16.msra.mxu0 0
        %750 = vmatprep.subr.bf16.mxu0 0
        %751 = vmatpush1.bf16.msra.mxu0 0
        %752 = vmatprep.subr.bf16.mxu0 0
        %753 = vmatpush1.bf16.msra.mxu0 0
        %754 = vmatprep.subr.bf16.mxu0 0
        %755 = vmatpush1.bf16.msra.mxu0 0
        %756 = vmatprep.subr.bf16.mxu0 0
        %757 = vmatpush1.bf16.msra.mxu0 0
        %758 = vmatprep.subr.bf16.mxu0 0
        %759 = vmatpush1.bf16.msra.mxu0 0
        %760 = vmatprep.subr.bf16.mxu0 0
        %761 = vmatpush1.bf16.msra.mxu0 %v742
        %762 = vmatprep.subr.bf16.mxu0 0
        %763 = vmatpush1.bf16.msra.mxu0 %v741
        %764 = vmatprep.subr.bf16.mxu0 0
        %765 = vmatpush2.bf16.msra.mxu0 0
        %766 = vmatprep.subr.bf16.mxu0 0
        %767 = vmatpush2.bf16.msra.mxu0 0
        %768 = vmatprep.subr.bf16.mxu0 0
        %769 = vmatpush2.bf16.msra.mxu0 0
        %770 = vmatprep.subr.bf16.mxu0 0
        %771 = vmatpush2.bf16.msra.mxu0 0
        %772 = vmatprep.subr.bf16.mxu0 0
        %773 = vmatpush2.bf16.msra.mxu0 0
        %774 = vmatprep.subr.bf16.mxu0 0
        %775 = vmatpush2.bf16.msra.mxu0 0
        %776 = vmatprep.subr.bf16.mxu0 0
        %777 = vmatpush2.bf16.msra.mxu0 0
        %778 = vmatprep.subr.bf16.mxu0 0
        %779 = vmatpush2.bf16.msra.mxu0 0
        %780 = vmatprep.mubr.bf16.mxu0 0
        %781 = vmatmul.mubr.bf16.gmra.mxu0 %v746
        %v782 = vpop.f32.mrf.mxu0
        %v783 = vadd.f32 %v480, %v782
        %v784 = vpop.f32.mrf.mxu0
        %v785 = vpop.f32.mrf.mxu0
        %v786 = vpop.f32.mrf.mxu0
        %787 = vdwg.mxu0
        %v792 = vunpack.c.l.b16 %v409
        %v793 = vunpack.c.l.b16 %v410
        %v794 = vunpack.c.l.b16 %v411
        %v795 = vunpack.c.l.b16 %v412
        %v796 = vpack.c.b16 %v793, %v792
        %v797 = vpack.c.b16 %v795, %v794
        %800 = vmatprep.subr.bf16.mxu0 0
        %801 = vmatpush1.bf16.msra.mxu0 0
        %802 = vmatprep.subr.bf16.mxu0 0
        %803 = vmatpush1.bf16.msra.mxu0 0
        %804 = vmatprep.subr.bf16.mxu0 0
        %805 = vmatpush1.bf16.msra.mxu0 0
        %806 = vmatprep.subr.bf16.mxu0 0
        %807 = vmatpush1.bf16.msra.mxu0 0
        %808 = vmatprep.subr.bf16.mxu0 0
        %809 = vmatpush1.bf16.msra.mxu0 0
        %810 = vmatprep.subr.bf16.mxu0 0
        %811 = vmatpush1.bf16.msra.mxu0 0
        %812 = vmatprep.subr.bf16.mxu0 0
        %813 = vmatpush1.bf16.msra.mxu0 %v797
        %814 = vmatprep.subr.bf16.mxu0 0
        %815 = vmatpush1.bf16.msra.mxu0 %v796
        %816 = vmatprep.subr.bf16.mxu0 0
        %817 = vmatpush2.bf16.msra.mxu0 0
        %818 = vmatprep.subr.bf16.mxu0 0
        %819 = vmatpush2.bf16.msra.mxu0 0
        %820 = vmatprep.subr.bf16.mxu0 0
        %821 = vmatpush2.bf16.msra.mxu0 0
        %822 = vmatprep.subr.bf16.mxu0 0
        %823 = vmatpush2.bf16.msra.mxu0 0
        %824 = vmatprep.subr.bf16.mxu0 0
        %825 = vmatpush2.bf16.msra.mxu0 0
        %826 = vmatprep.subr.bf16.mxu0 0
        %827 = vmatpush2.bf16.msra.mxu0 0
        %828 = vmatprep.subr.bf16.mxu0 0
        %829 = vmatpush2.bf16.msra.mxu0 0
        %830 = vmatprep.subr.bf16.mxu0 0
        %831 = vmatpush2.bf16.msra.mxu0 0
        %832 = vmatprep.mubr.bf16.mxu0 0
        %833 = vmatmul.mubr.bf16.gmra.mxu0 %v746
        %v834 = vpop.f32.mrf.mxu0
        %v835 = vadd.f32 %v484, %v834
        %v836 = vpop.f32.mrf.mxu0
        %v837 = vpop.f32.mrf.mxu0
        %v838 = vpop.f32.mrf.mxu0
        %839 = vdwg.mxu0
        %v844 = vunpack.c.l.b16 %v413
        %v845 = vunpack.c.l.b16 %v414
        %v846 = vunpack.c.l.b16 %v415
        %v847 = vunpack.c.l.b16 %v416
        %v848 = vpack.c.b16 %v845, %v844
        %v849 = vpack.c.b16 %v847, %v846
        %852 = vmatprep.subr.bf16.mxu0 0
        %853 = vmatpush1.bf16.msra.mxu0 0
        %854 = vmatprep.subr.bf16.mxu0 0
        %855 = vmatpush1.bf16.msra.mxu0 0
        %856 = vmatprep.subr.bf16.mxu0 0
        %857 = vmatpush1.bf16.msra.mxu0 0
        %858 = vmatprep.subr.bf16.mxu0 0
        %859 = vmatpush1.bf16.msra.mxu0 0
        %860 = vmatprep.subr.bf16.mxu0 0
        %861 = vmatpush1.bf16.msra.mxu0 0
        %862 = vmatprep.subr.bf16.mxu0 0
        %863 = vmatpush1.bf16.msra.mxu0 0
        %864 = vmatprep.subr.bf16.mxu0 0
        %865 = vmatpush1.bf16.msra.mxu0 %v849
        %866 = vmatprep.subr.bf16.mxu0 0
        %867 = vmatpush1.bf16.msra.mxu0 %v848
        %868 = vmatprep.subr.bf16.mxu0 0
        %869 = vmatpush2.bf16.msra.mxu0 0
        %870 = vmatprep.subr.bf16.mxu0 0
        %871 = vmatpush2.bf16.msra.mxu0 0
        %872 = vmatprep.subr.bf16.mxu0 0
        %873 = vmatpush2.bf16.msra.mxu0 0
        %874 = vmatprep.subr.bf16.mxu0 0
        %875 = vmatpush2.bf16.msra.mxu0 0
        %876 = vmatprep.subr.bf16.mxu0 0
        %877 = vmatpush2.bf16.msra.mxu0 0
        %878 = vmatprep.subr.bf16.mxu0 0
        %879 = vmatpush2.bf16.msra.mxu0 0
        %880 = vmatprep.subr.bf16.mxu0 0
        %881 = vmatpush2.bf16.msra.mxu0 0
        %882 = vmatprep.subr.bf16.mxu0 0
        %883 = vmatpush2.bf16.msra.mxu0 0
        %884 = vmatprep.mubr.bf16.mxu0 0
        %885 = vmatmul.mubr.bf16.gmra.mxu0 %v746
        %v886 = vpop.f32.mrf.mxu0
        %v887 = vadd.f32 %v488, %v886
        %v888 = vpop.f32.mrf.mxu0
        %v889 = vpop.f32.mrf.mxu0
        %v890 = vpop.f32.mrf.mxu0
        %891 = vdwg.mxu0
        %v896 = vunpack.c.l.b16 %v417
        %v897 = vunpack.c.l.b16 %v418
        %v898 = vunpack.c.l.b16 %v419
        %v899 = vunpack.c.l.b16 %v420
        %v900 = vpack.c.b16 %v897, %v896
        %v901 = vpack.c.b16 %v899, %v898
        %904 = vmatprep.subr.bf16.mxu0 0
        %905 = vmatpush1.bf16.msra.mxu0 0
        %906 = vmatprep.subr.bf16.mxu0 0
        %907 = vmatpush1.bf16.msra.mxu0 0
        %908 = vmatprep.subr.bf16.mxu0 0
        %909 = vmatpush1.bf16.msra.mxu0 0
        %910 = vmatprep.subr.bf16.mxu0 0
        %911 = vmatpush1.bf16.msra.mxu0 0
        %912 = vmatprep.subr.bf16.mxu0 0
        %913 = vmatpush1.bf16.msra.mxu0 0
        %914 = vmatprep.subr.bf16.mxu0 0
        %915 = vmatpush1.bf16.msra.mxu0 0
        %916 = vmatprep.subr.bf16.mxu0 0
        %917 = vmatpush1.bf16.msra.mxu0 %v901
        %918 = vmatprep.subr.bf16.mxu0 0
        %919 = vmatpush1.bf16.msra.mxu0 %v900
        %920 = vmatprep.subr.bf16.mxu0 0
        %921 = vmatpush2.bf16.msra.mxu0 0
        %922 = vmatprep.subr.bf16.mxu0 0
        %923 = vmatpush2.bf16.msra.mxu0 0
        %924 = vmatprep.subr.bf16.mxu0 0
        %925 = vmatpush2.bf16.msra.mxu0 0
        %926 = vmatprep.subr.bf16.mxu0 0
        %927 = vmatpush2.bf16.msra.mxu0 0
        %928 = vmatprep.subr.bf16.mxu0 0
        %929 = vmatpush2.bf16.msra.mxu0 0
        %930 = vmatprep.subr.bf16.mxu0 0
        %931 = vmatpush2.bf16.msra.mxu0 0
        %932 = vmatprep.subr.bf16.mxu0 0
        %933 = vmatpush2.bf16.msra.mxu0 0
        %934 = vmatprep.subr.bf16.mxu0 0
        %935 = vmatpush2.bf16.msra.mxu0 0
        %936 = vmatprep.mubr.bf16.mxu0 0
        %937 = vmatmul.mubr.bf16.gmra.mxu0 %v746
        %v938 = vpop.f32.mrf.mxu0
        %v939 = vadd.f32 %v492, %v938
        %v940 = vpop.f32.mrf.mxu0
        %v941 = vpop.f32.mrf.mxu0
        %v942 = vpop.f32.mrf.mxu0
        %943 = vdwg.mxu0
        %v948 = vunpack.c.l.b16 %v421
        %v949 = vunpack.c.l.b16 %v422
        %v950 = vunpack.c.l.b16 %v423
        %v951 = vunpack.c.l.b16 %v424
        %v952 = vpack.c.b16 %v949, %v948
        %v953 = vpack.c.b16 %v951, %v950
        %v957 = vsel %vm533, %v388, 0
        %959 = vmatprep.subr.bf16.mxu0 0
        %960 = vmatpush1.bf16.msra.mxu0 0
        %961 = vmatprep.subr.bf16.mxu0 0
        %962 = vmatpush1.bf16.msra.mxu0 0
        %963 = vmatprep.subr.bf16.mxu0 0
        %964 = vmatpush1.bf16.msra.mxu0 0
        %965 = vmatprep.subr.bf16.mxu0 0
        %966 = vmatpush1.bf16.msra.mxu0 0
        %967 = vmatprep.subr.bf16.mxu0 0
        %968 = vmatpush1.bf16.msra.mxu0 0
        %969 = vmatprep.subr.bf16.mxu0 0
        %970 = vmatpush1.bf16.msra.mxu0 0
        %971 = vmatprep.subr.bf16.mxu0 0
        %972 = vmatpush1.bf16.msra.mxu0 %v953
        %973 = vmatprep.subr.bf16.mxu0 0
        %974 = vmatpush1.bf16.msra.mxu0 %v952
        %975 = vmatprep.subr.bf16.mxu0 0
        %976 = vmatpush2.bf16.msra.mxu0 0
        %977 = vmatprep.subr.bf16.mxu0 0
        %978 = vmatpush2.bf16.msra.mxu0 0
        %979 = vmatprep.subr.bf16.mxu0 0
        %980 = vmatpush2.bf16.msra.mxu0 0
        %981 = vmatprep.subr.bf16.mxu0 0
        %982 = vmatpush2.bf16.msra.mxu0 0
        %983 = vmatprep.subr.bf16.mxu0 0
        %984 = vmatpush2.bf16.msra.mxu0 0
        %985 = vmatprep.subr.bf16.mxu0 0
        %986 = vmatpush2.bf16.msra.mxu0 0
        %987 = vmatprep.subr.bf16.mxu0 0
        %988 = vmatpush2.bf16.msra.mxu0 0
        %989 = vmatprep.subr.bf16.mxu0 0
        %990 = vmatpush2.bf16.msra.mxu0 0
        %991 = vmatprep.mubr.bf16.mxu0 0
        %992 = vmatmul.mubr.bf16.gmra.mxu0 %v957
        %v993 = vpop.f32.mrf.mxu0
        %v994 = vadd.f32 %v496, %v993
        %v995 = vpop.f32.mrf.mxu0
        %v996 = vpop.f32.mrf.mxu0
        %v997 = vpop.f32.mrf.mxu0
        %998 = vdwg.mxu0
        %v1003 = vunpack.c.l.b16 %v425
        %v1004 = vunpack.c.l.b16 %v426
        %v1005 = vunpack.c.l.b16 %v427
        %v1006 = vunpack.c.l.b16 %v428
        %v1007 = vpack.c.b16 %v1004, %v1003
        %v1008 = vpack.c.b16 %v1006, %v1005
        %1011 = vmatprep.subr.bf16.mxu0 0
        %1012 = vmatpush1.bf16.msra.mxu0 0
        %1013 = vmatprep.subr.bf16.mxu0 0
        %1014 = vmatpush1.bf16.msra.mxu0 0
        %1015 = vmatprep.subr.bf16.mxu0 0
        %1016 = vmatpush1.bf16.msra.mxu0 0
        %1017 = vmatprep.subr.bf16.mxu0 0
        %1018 = vmatpush1.bf16.msra.mxu0 0
        %1019 = vmatprep.subr.bf16.mxu0 0
        %1020 = vmatpush1.bf16.msra.mxu0 0
        %1021 = vmatprep.subr.bf16.mxu0 0
        %1022 = vmatpush1.bf16.msra.mxu0 0
        %1023 = vmatprep.subr.bf16.mxu0 0
        %1024 = vmatpush1.bf16.msra.mxu0 %v1008
        %1025 = vmatprep.subr.bf16.mxu0 0
        %1026 = vmatpush1.bf16.msra.mxu0 %v1007
        %1027 = vmatprep.subr.bf16.mxu0 0
        %1028 = vmatpush2.bf16.msra.mxu0 0
        %1029 = vmatprep.subr.bf16.mxu0 0
        %1030 = vmatpush2.bf16.msra.mxu0 0
        %1031 = vmatprep.subr.bf16.mxu0 0
        %1032 = vmatpush2.bf16.msra.mxu0 0
        %1033 = vmatprep.subr.bf16.mxu0 0
        %1034 = vmatpush2.bf16.msra.mxu0 0
        %1035 = vmatprep.subr.bf16.mxu0 0
        %1036 = vmatpush2.bf16.msra.mxu0 0
        %1037 = vmatprep.subr.bf16.mxu0 0
        %1038 = vmatpush2.bf16.msra.mxu0 0
        %1039 = vmatprep.subr.bf16.mxu0 0
        %1040 = vmatpush2.bf16.msra.mxu0 0
        %1041 = vmatprep.subr.bf16.mxu0 0
        %1042 = vmatpush2.bf16.msra.mxu0 0
        %1043 = vmatprep.mubr.bf16.mxu0 0
        %1044 = vmatmul.mubr.bf16.gmra.mxu0 %v957
        %v1045 = vpop.f32.mrf.mxu0
        %v1046 = vadd.f32 %v500, %v1045
        %v1047 = vpop.f32.mrf.mxu0
        %v1048 = vpop.f32.mrf.mxu0
        %v1049 = vpop.f32.mrf.mxu0
        %1050 = vdwg.mxu0
        %v1055 = vunpack.c.l.b16 %v429
        %v1056 = vunpack.c.l.b16 %v430
        %v1057 = vunpack.c.l.b16 %v431
        %v1058 = vunpack.c.l.b16 %v432
        %v1059 = vpack.c.b16 %v1056, %v1055
        %v1060 = vpack.c.b16 %v1058, %v1057
        %1063 = vmatprep.subr.bf16.mxu0 0
        %1064 = vmatpush1.bf16.msra.mxu0 0
        %1065 = vmatprep.subr.bf16.mxu0 0
        %1066 = vmatpush1.bf16.msra.mxu0 0
        %1067 = vmatprep.subr.bf16.mxu0 0
        %1068 = vmatpush1.bf16.msra.mxu0 0
        %1069 = vmatprep.subr.bf16.mxu0 0
        %1070 = vmatpush1.bf16.msra.mxu0 0
        %1071 = vmatprep.subr.bf16.mxu0 0
        %1072 = vmatpush1.bf16.msra.mxu0 0
        %1073 = vmatprep.subr.bf16.mxu0 0
        %1074 = vmatpush1.bf16.msra.mxu0 0
        %1075 = vmatprep.subr.bf16.mxu0 0
        %1076 = vmatpush1.bf16.msra.mxu0 %v1060
        %1077 = vmatprep.subr.bf16.mxu0 0
        %1078 = vmatpush1.bf16.msra.mxu0 %v1059
        %1079 = vmatprep.subr.bf16.mxu0 0
        %1080 = vmatpush2.bf16.msra.mxu0 0
        %1081 = vmatprep.subr.bf16.mxu0 0
        %1082 = vmatpush2.bf16.msra.mxu0 0
        %1083 = vmatprep.subr.bf16.mxu0 0
        %1084 = vmatpush2.bf16.msra.mxu0 0
        %1085 = vmatprep.subr.bf16.mxu0 0
        %1086 = vmatpush2.bf16.msra.mxu0 0
        %1087 = vmatprep.subr.bf16.mxu0 0
        %1088 = vmatpush2.bf16.msra.mxu0 0
        %1089 = vmatprep.subr.bf16.mxu0 0
        %1090 = vmatpush2.bf16.msra.mxu0 0
        %1091 = vmatprep.subr.bf16.mxu0 0
        %1092 = vmatpush2.bf16.msra.mxu0 0
        %1093 = vmatprep.subr.bf16.mxu0 0
        %1094 = vmatpush2.bf16.msra.mxu0 0
        %1095 = vmatprep.mubr.bf16.mxu0 0
        %1096 = vmatmul.mubr.bf16.gmra.mxu0 %v957
        %v1097 = vpop.f32.mrf.mxu0
        %v1098 = vadd.f32 %v504, %v1097
        %v1099 = vpop.f32.mrf.mxu0
        %v1100 = vpop.f32.mrf.mxu0
        %v1101 = vpop.f32.mrf.mxu0
        %1102 = vdwg.mxu0
        %v1107 = vunpack.c.l.b16 %v433
        %v1108 = vunpack.c.l.b16 %v434
        %v1109 = vunpack.c.l.b16 %v435
        %v1110 = vunpack.c.l.b16 %v436
        %v1111 = vpack.c.b16 %v1108, %v1107
        %v1112 = vpack.c.b16 %v1110, %v1109
        %1115 = vmatprep.subr.bf16.mxu0 0
        %1116 = vmatpush1.bf16.msra.mxu0 0
        %1117 = vmatprep.subr.bf16.mxu0 0
        %1118 = vmatpush1.bf16.msra.mxu0 0
        %1119 = vmatprep.subr.bf16.mxu0 0
        %1120 = vmatpush1.bf16.msra.mxu0 0
        %1121 = vmatprep.subr.bf16.mxu0 0
        %1122 = vmatpush1.bf16.msra.mxu0 0
        %1123 = vmatprep.subr.bf16.mxu0 0
        %1124 = vmatpush1.bf16.msra.mxu0 0
        %1125 = vmatprep.subr.bf16.mxu0 0
        %1126 = vmatpush1.bf16.msra.mxu0 0
        %1127 = vmatprep.subr.bf16.mxu0 0
        %1128 = vmatpush1.bf16.msra.mxu0 %v1112
        %1129 = vmatprep.subr.bf16.mxu0 0
        %1130 = vmatpush1.bf16.msra.mxu0 %v1111
        %1131 = vmatprep.subr.bf16.mxu0 0
        %1132 = vmatpush2.bf16.msra.mxu0 0
        %1133 = vmatprep.subr.bf16.mxu0 0
        %1134 = vmatpush2.bf16.msra.mxu0 0
        %1135 = vmatprep.subr.bf16.mxu0 0
        %1136 = vmatpush2.bf16.msra.mxu0 0
        %1137 = vmatprep.subr.bf16.mxu0 0
        %1138 = vmatpush2.bf16.msra.mxu0 0
        %1139 = vmatprep.subr.bf16.mxu0 0
        %1140 = vmatpush2.bf16.msra.mxu0 0
        %1141 = vmatprep.subr.bf16.mxu0 0
        %1142 = vmatpush2.bf16.msra.mxu0 0
        %1143 = vmatprep.subr.bf16.mxu0 0
        %1144 = vmatpush2.bf16.msra.mxu0 0
        %1145 = vmatprep.subr.bf16.mxu0 0
        %1146 = vmatpush2.bf16.msra.mxu0 0
        %1147 = vmatprep.mubr.bf16.mxu0 0
        %1148 = vmatmul.mubr.bf16.gmra.mxu0 %v957
        %v1149 = vpop.f32.mrf.mxu0
        %v1150 = vadd.f32 %v508, %v1149
        %v1151 = vpop.f32.mrf.mxu0
        %v1152 = vpop.f32.mrf.mxu0
        %v1153 = vpop.f32.mrf.mxu0
        %1154 = vdwg.mxu0
        %v1155 = vpack.c.bf16 %v572, %v572
        %v1156 = vpack.c.bf16 %v624, %v624
        %v1157 = vpack.c.bf16 %v676, %v676
        %v1158 = vpack.c.bf16 %v728, %v728
        %v1159 = vpack.c.bf16 %v783, %v783
        %v1160 = vpack.c.bf16 %v835, %v835
        %v1161 = vpack.c.bf16 %v887, %v887
        %v1162 = vpack.c.bf16 %v939, %v939
        %v1163 = vpack.c.bf16 %v994, %v994
        %v1164 = vpack.c.bf16 %v1046, %v1046
        %v1165 = vpack.c.bf16 %v1098, %v1098
        %v1166 = vpack.c.bf16 %v1150, %v1150
        %vm1167 = vcmask 64512
        %v1169 = vsel %vm1167, %v1155, 0
        %v1172 = vsel %vm1167, %v1159, 0
        %1174 = vmatprep.subr.bf16.mxu0 0
        %1175 = vmatpush1.bf16.xpose.msra.mxu0 0
        %1176 = vmatprep.subr.bf16.mxu0 0
        %1177 = vmatpush1.bf16.xpose.msra.mxu0 0
        %1178 = vmatprep.subr.bf16.mxu0 0
        %1179 = vmatpush1.bf16.xpose.msra.mxu0 0
        %1180 = vmatprep.subr.bf16.mxu0 0
        %1181 = vmatpush1.bf16.xpose.msra.mxu0 0
        %1182 = vmatprep.subr.bf16.mxu0 0
        %1183 = vmatpush1.bf16.xpose.msra.mxu0 0
        %1184 = vmatprep.subr.bf16.mxu0 0
        %1185 = vmatpush1.bf16.xpose.msra.mxu0 0
        %1186 = vmatprep.subr.bf16.mxu0 0
        %1187 = vmatpush1.bf16.xpose.msra.mxu0 0
        %1188 = vmatprep.subr.bf16.mxu0 0
        %1189 = vmatpush1.bf16.xpose.msra.mxu0 %v1172
        %1190 = vmatprep.subr.bf16.mxu0 0
        %1191 = vmatpush2.bf16.xpose.msra.mxu0 0
        %1192 = vmatprep.subr.bf16.mxu0 0
        %1193 = vmatpush2.bf16.xpose.msra.mxu0 0
        %1194 = vmatprep.subr.bf16.mxu0 0
        %1195 = vmatpush2.bf16.xpose.msra.mxu0 0
        %1196 = vmatprep.subr.bf16.mxu0 0
        %1197 = vmatpush2.bf16.xpose.msra.mxu0 0
        %1198 = vmatprep.subr.bf16.mxu0 0
        %1199 = vmatpush2.bf16.xpose.msra.mxu0 0
        %1200 = vmatprep.subr.bf16.mxu0 0
        %1201 = vmatpush2.bf16.xpose.msra.mxu0 0
        %1202 = vmatprep.subr.bf16.mxu0 0
        %1203 = vmatpush2.bf16.xpose.msra.mxu0 0
        %1204 = vmatprep.subr.bf16.mxu0 0
        %1205 = vmatpush2.bf16.xpose.msra.mxu0 0
        %1206 = vmatprep.mubr.bf16.mxu0 0
        %1207 = vmatmul.mubr.bf16.gmra.mxu0 %v1169
        %v1208 = vpop.f32.mrf.mxu0
        %v1209 = vadd.f32 0.0, %v1208
        %v1210 = vpop.f32.mrf.mxu0
        %v1211 = vpop.f32.mrf.mxu0
        %v1212 = vpop.f32.mrf.mxu0
        %1213 = vdwg.mxu0
        %v1215 = vsel %vm1167, %v1156, 0
        %v1218 = vsel %vm1167, %v1160, 0
        %1220 = vmatprep.subr.bf16.mxu0 0
        %1221 = vmatpush1.bf16.xpose.msra.mxu0 0
        %1222 = vmatprep.subr.bf16.mxu0 0
        %1223 = vmatpush1.bf16.xpose.msra.mxu0 0
        %1224 = vmatprep.subr.bf16.mxu0 0
        %1225 = vmatpush1.bf16.xpose.msra.mxu0 0
        %1226 = vmatprep.subr.bf16.mxu0 0
        %1227 = vmatpush1.bf16.xpose.msra.mxu0 0
        %1228 = vmatprep.subr.bf16.mxu0 0
        %1229 = vmatpush1.bf16.xpose.msra.mxu0 0
        %1230 = vmatprep.subr.bf16.mxu0 0
        %1231 = vmatpush1.bf16.xpose.msra.mxu0 0
        %1232 = vmatprep.subr.bf16.mxu0 0
        %1233 = vmatpush1.bf16.xpose.msra.mxu0 0
        %1234 = vmatprep.subr.bf16.mxu0 0
        %1235 = vmatpush1.bf16.xpose.msra.mxu0 %v1218
        %1236 = vmatprep.subr.bf16.mxu0 0
        %1237 = vmatpush2.bf16.xpose.msra.mxu0 0
        %1238 = vmatprep.subr.bf16.mxu0 0
        %1239 = vmatpush2.bf16.xpose.msra.mxu0 0
        %1240 = vmatprep.subr.bf16.mxu0 0
        %1241 = vmatpush2.bf16.xpose.msra.mxu0 0
        %1242 = vmatprep.subr.bf16.mxu0 0
        %1243 = vmatpush2.bf16.xpose.msra.mxu0 0
        %1244 = vmatprep.subr.bf16.mxu0 0
        %1245 = vmatpush2.bf16.xpose.msra.mxu0 0
        %1246 = vmatprep.subr.bf16.mxu0 0
        %1247 = vmatpush2.bf16.xpose.msra.mxu0 0
        %1248 = vmatprep.subr.bf16.mxu0 0
        %1249 = vmatpush2.bf16.xpose.msra.mxu0 0
        %1250 = vmatprep.subr.bf16.mxu0 0
        %1251 = vmatpush2.bf16.xpose.msra.mxu0 0
        %1252 = vmatprep.mubr.bf16.mxu0 0
        %1253 = vmatmul.mubr.bf16.gmra.mxu0 %v1215
        %v1254 = vpop.f32.mrf.mxu0
        %v1255 = vadd.f32 0.0, %v1254
        %v1256 = vpop.f32.mrf.mxu0
        %v1257 = vpop.f32.mrf.mxu0
        %v1258 = vpop.f32.mrf.mxu0
        %1259 = vdwg.mxu0
        %v1261 = vsel %vm1167, %v1157, 0
        %v1264 = vsel %vm1167, %v1161, 0
        %1266 = vmatprep.subr.bf16.mxu0 0
        %1267 = vmatpush1.bf16.xpose.msra.mxu0 0
        %1268 = vmatprep.subr.bf16.mxu0 0
        %1269 = vmatpush1.bf16.xpose.msra.mxu0 0
        %1270 = vmatprep.subr.bf16.mxu0 0
        %1271 = vmatpush1.bf16.xpose.msra.mxu0 0
        %1272 = vmatprep.subr.bf16.mxu0 0
        %1273 = vmatpush1.bf16.xpose.msra.mxu0 0
        %1274 = vmatprep.subr.bf16.mxu0 0
        %1275 = vmatpush1.bf16.xpose.msra.mxu0 0
        %1276 = vmatprep.subr.bf16.mxu0 0
        %1277 = vmatpush1.bf16.xpose.msra.mxu0 0
        %1278 = vmatprep.subr.bf16.mxu0 0
        %1279 = vmatpush1.bf16.xpose.msra.mxu0 0
        %1280 = vmatprep.subr.bf16.mxu0 0
        %1281 = vmatpush1.bf16.xpose.msra.mxu0 %v1264
        %1282 = vmatprep.subr.bf16.mxu0 0
        %1283 = vmatpush2.bf16.xpose.msra.mxu0 0
        %1284 = vmatprep.subr.bf16.mxu0 0
        %1285 = vmatpush2.bf16.xpose.msra.mxu0 0
        %1286 = vmatprep.subr.bf16.mxu0 0
        %1287 = vmatpush2.bf16.xpose.msra.mxu0 0
        %1288 = vmatprep.subr.bf16.mxu0 0
        %1289 = vmatpush2.bf16.xpose.msra.mxu0 0
        %1290 = vmatprep.subr.bf16.mxu0 0
        %1291 = vmatpush2.bf16.xpose.msra.mxu0 0
        %1292 = vmatprep.subr.bf16.mxu0 0
        %1293 = vmatpush2.bf16.xpose.msra.mxu0 0
        %1294 = vmatprep.subr.bf16.mxu0 0
        %1295 = vmatpush2.bf16.xpose.msra.mxu0 0
        %1296 = vmatprep.subr.bf16.mxu0 0
        %1297 = vmatpush2.bf16.xpose.msra.mxu0 0
        %1298 = vmatprep.mubr.bf16.mxu0 0
        %1299 = vmatmul.mubr.bf16.gmra.mxu0 %v1261
        %v1300 = vpop.f32.mrf.mxu0
        %v1301 = vadd.f32 0.0, %v1300
        %v1302 = vpop.f32.mrf.mxu0
        %v1303 = vpop.f32.mrf.mxu0
        %v1304 = vpop.f32.mrf.mxu0
        %1305 = vdwg.mxu0
        %v1307 = vsel %vm1167, %v1158, 0
        %v1310 = vsel %vm1167, %v1162, 0
        %1312 = vmatprep.subr.bf16.mxu0 0
        %1313 = vmatpush1.bf16.xpose.msra.mxu0 0
        %1314 = vmatprep.subr.bf16.mxu0 0
        %1315 = vmatpush1.bf16.xpose.msra.mxu0 0
        %1316 = vmatprep.subr.bf16.mxu0 0
        %1317 = vmatpush1.bf16.xpose.msra.mxu0 0
        %1318 = vmatprep.subr.bf16.mxu0 0
        %1319 = vmatpush1.bf16.xpose.msra.mxu0 0
        %1320 = vmatprep.subr.bf16.mxu0 0
        %1321 = vmatpush1.bf16.xpose.msra.mxu0 0
        %1322 = vmatprep.subr.bf16.mxu0 0
        %1323 = vmatpush1.bf16.xpose.msra.mxu0 0
        %1324 = vmatprep.subr.bf16.mxu0 0
        %1325 = vmatpush1.bf16.xpose.msra.mxu0 0
        %1326 = vmatprep.subr.bf16.mxu0 0
        %1327 = vmatpush1.bf16.xpose.msra.mxu0 %v1310
        %1328 = vmatprep.subr.bf16.mxu0 0
        %1329 = vmatpush2.bf16.xpose.msra.mxu0 0
        %1330 = vmatprep.subr.bf16.mxu0 0
        %1331 = vmatpush2.bf16.xpose.msra.mxu0 0
        %1332 = vmatprep.subr.bf16.mxu0 0
        %1333 = vmatpush2.bf16.xpose.msra.mxu0 0
        %1334 = vmatprep.subr.bf16.mxu0 0
        %1335 = vmatpush2.bf16.xpose.msra.mxu0 0
        %1336 = vmatprep.subr.bf16.mxu0 0
        %1337 = vmatpush2.bf16.xpose.msra.mxu0 0
        %1338 = vmatprep.subr.bf16.mxu0 0
        %1339 = vmatpush2.bf16.xpose.msra.mxu0 0
        %1340 = vmatprep.subr.bf16.mxu0 0
        %1341 = vmatpush2.bf16.xpose.msra.mxu0 0
        %1342 = vmatprep.subr.bf16.mxu0 0
        %1343 = vmatpush2.bf16.xpose.msra.mxu0 0
        %1344 = vmatprep.mubr.bf16.mxu0 0
        %1345 = vmatmul.mubr.bf16.gmra.mxu0 %v1307
        %v1346 = vpop.f32.mrf.mxu0
        %v1347 = vadd.f32 0.0, %v1346
        %v1348 = vpop.f32.mrf.mxu0
        %v1349 = vpop.f32.mrf.mxu0
        %v1350 = vpop.f32.mrf.mxu0
        %1351 = vdwg.mxu0
        %v1352 = vld [vmem:[%s381] sm:$0xff]
        %vm1353 = vcmp.ne.s32.totalorder %v1352, 0
        %v1354 = vsel %vm1353, 1, 0
        %vm1355 = vcmp.eq.s32.totalorder %v1354, 1
        %v1356 = vsel %vm1355, -1e+09, %v1209
        %v1357 = vsel %vm1355, -1e+09, %v1255
        %v1358 = vsel %vm1355, -1e+09, %v1301
        %v1359 = vsel %vm1355, -1e+09, %v1347
        %1360 = vst.msk [vmem:[%s377] sm:$0xff] %vm1167, %v1356
        %1361 = vst.msk [vmem:[%s377 + $0x8] sm:$0xff] %vm1167, %v1357
        %1362 = vst.msk [vmem:[%s377 + $0x10] sm:$0xff] %vm1167, %v1358
        %1363 = vst.msk [vmem:[%s377 + $0x18] sm:$0xff] %vm1167, %v1359
        %v1364 = vsel %vm1167, %v1356, -inf
        %1365 = vmax.xlane.f32.xlu0 %v1364
        %v1366 = vpop.xlane.xlu0 %1365
        %v1367 = vsel %vm1167, %v1357, -inf
        %1368 = vmax.xlane.f32.xlu0 %v1367
        %v1369 = vpop.xlane.xlu0 %1368
        %v1370 = vsel %vm1167, %v1358, -inf
        %1371 = vmax.xlane.f32.xlu0 %v1370
        %v1372 = vpop.xlane.xlu0 %1371
        %v1373 = vsel %vm1167, %v1359, -inf
        %1374 = vmax.xlane.f32.xlu0 %v1373
        %v1375 = vpop.xlane.xlu0 %1374
        %v1376 = vsub.f32 %v1356, %v1366
        %v1377 = vsub.f32 %v1357, %v1369
        %v1378 = vsub.f32 %v1358, %v1372
        %v1379 = vsub.f32 %v1359, %v1375
        %v1380 = vmul.f32 %v1376, 1.442695
        %v1381 = vpow.pop %v1380
        %v1382 = vmul.f32 %v1377, 1.442695
        %v1383 = vpow.pop %v1382
        %v1384 = vmul.f32 %v1378, 1.442695
        %v1385 = vpow.pop %v1384
        %v1386 = vmul.f32 %v1379, 1.442695
        %v1387 = vpow.pop %v1386
        %v1388 = vsel %vm1167, %v1381, 0.0
        %1389 = vadd.xlane.f32.xlu0 %v1388
        %v1390 = vpop.xlane.xlu0 %1389
        %v1391 = vsel %vm1167, %v1383, 0.0
        %1392 = vadd.xlane.f32.xlu0 %v1391
        %v1393 = vpop.xlane.xlu0 %1392
        %v1394 = vsel %vm1167, %v1385, 0.0
        %1395 = vadd.xlane.f32.xlu0 %v1394
        %v1396 = vpop.xlane.xlu0 %1395
        %v1397 = vsel %vm1167, %v1387, 0.0
        %1398 = vadd.xlane.f32.xlu0 %v1397
        %v1399 = vpop.xlane.xlu0 %1398
        %v1400 = vrcp.pop %v1390
        %v1401 = vrcp.pop %v1393
        %v1402 = vrcp.pop %v1396
        %v1403 = vrcp.pop %v1399
        %v1404 = vmul.f32 %v1381, %v1400
        %v1405 = vmul.f32 %v1383, %v1401
        %v1406 = vmul.f32 %v1385, %v1402
        %v1407 = vmul.f32 %v1387, %v1403
        %1408 = vst.msk [vmem:[%s370] sm:$0xff] %vm1167, %v1404
        %1409 = vst.msk [vmem:[%s370 + $0x8] sm:$0xff] %vm1167, %v1405
        %1410 = vst.msk [vmem:[%s370 + $0x10] sm:$0xff] %vm1167, %v1406
        %1411 = vst.msk [vmem:[%s370 + $0x18] sm:$0xff] %vm1167, %v1407
        %v1412 = vpack.c.bf16 %v1404, %v1404
        %v1413 = vpack.c.bf16 %v1405, %v1405
        %v1414 = vpack.c.bf16 %v1406, %v1406
        %v1415 = vpack.c.bf16 %v1407, %v1407
        %v1417 = vsel %vm1167, %v1412, 0
        %vm1419 = vcmask 1043456
        %v1421 = vsel %vm1419, %v1163, 0
        %1423 = vmatprep.subr.bf16.mxu0 0
        %1424 = vmatpush1.bf16.msra.mxu0 0
        %1425 = vmatprep.subr.bf16.mxu0 0
        %1426 = vmatpush1.bf16.msra.mxu0 0
        %1427 = vmatprep.subr.bf16.mxu0 0
        %1428 = vmatpush1.bf16.msra.mxu0 0
        %1429 = vmatprep.subr.bf16.mxu0 0
        %1430 = vmatpush1.bf16.msra.mxu0 0
        %1431 = vmatprep.subr.bf16.mxu0 0
        %1432 = vmatpush1.bf16.msra.mxu0 0
        %1433 = vmatprep.subr.bf16.mxu0 0
        %1434 = vmatpush1.bf16.msra.mxu0 0
        %1435 = vmatprep.subr.bf16.mxu0 0
        %1436 = vmatpush1.bf16.msra.mxu0 0
        %1437 = vmatprep.subr.bf16.mxu0 0
        %1438 = vmatpush1.bf16.msra.mxu0 %v1421
        %1439 = vmatprep.subr.bf16.mxu0 0
        %1440 = vmatpush2.bf16.msra.mxu0 0
        %1441 = vmatprep.subr.bf16.mxu0 0
        %1442 = vmatpush2.bf16.msra.mxu0 0
        %1443 = vmatprep.subr.bf16.mxu0 0
        %1444 = vmatpush2.bf16.msra.mxu0 0
        %1445 = vmatprep.subr.bf16.mxu0 0
        %1446 = vmatpush2.bf16.msra.mxu0 0
        %1447 = vmatprep.subr.bf16.mxu0 0
        %1448 = vmatpush2.bf16.msra.mxu0 0
        %1449 = vmatprep.subr.bf16.mxu0 0
        %1450 = vmatpush2.bf16.msra.mxu0 0
        %1451 = vmatprep.subr.bf16.mxu0 0
        %1452 = vmatpush2.bf16.msra.mxu0 0
        %1453 = vmatprep.subr.bf16.mxu0 0
        %1454 = vmatpush2.bf16.msra.mxu0 0
        %1455 = vmatprep.mubr.bf16.mxu0 0
        %1456 = vmatmul.mubr.bf16.gmra.mxu0 %v1417
        %v1457 = vpop.f32.mrf.mxu0
        %v1458 = vadd.f32 0.0, %v1457
        %v1459 = vpop.f32.mrf.mxu0
        %v1460 = vpop.f32.mrf.mxu0
        %v1461 = vpop.f32.mrf.mxu0
        %1462 = vdwg.mxu0
        %v1464 = vsel %vm1167, %v1413, 0
        %v1467 = vsel %vm1419, %v1164, 0
        %1469 = vmatprep.subr.bf16.mxu0 0
        %1470 = vmatpush1.bf16.msra.mxu0 0
        %1471 = vmatprep.subr.bf16.mxu0 0
        %1472 = vmatpush1.bf16.msra.mxu0 0
        %1473 = vmatprep.subr.bf16.mxu0 0
        %1474 = vmatpush1.bf16.msra.mxu0 0
        %1475 = vmatprep.subr.bf16.mxu0 0
        %1476 = vmatpush1.bf16.msra.mxu0 0
        %1477 = vmatprep.subr.bf16.mxu0 0
        %1478 = vmatpush1.bf16.msra.mxu0 0
        %1479 = vmatprep.subr.bf16.mxu0 0
        %1480 = vmatpush1.bf16.msra.mxu0 0
        %1481 = vmatprep.subr.bf16.mxu0 0
        %1482 = vmatpush1.bf16.msra.mxu0 0
        %1483 = vmatprep.subr.bf16.mxu0 0
        %1484 = vmatpush1.bf16.msra.mxu0 %v1467
        %1485 = vmatprep.subr.bf16.mxu0 0
        %1486 = vmatpush2.bf16.msra.mxu0 0
        %1487 = vmatprep.subr.bf16.mxu0 0
        %1488 = vmatpush2.bf16.msra.mxu0 0
        %1489 = vmatprep.subr.bf16.mxu0 0
        %1490 = vmatpush2.bf16.msra.mxu0 0
        %1491 = vmatprep.subr.bf16.mxu0 0
        %1492 = vmatpush2.bf16.msra.mxu0 0
        %1493 = vmatprep.subr.bf16.mxu0 0
        %1494 = vmatpush2.bf16.msra.mxu0 0
        %1495 = vmatprep.subr.bf16.mxu0 0
        %1496 = vmatpush2.bf16.msra.mxu0 0
        %1497 = vmatprep.subr.bf16.mxu0 0
        %1498 = vmatpush2.bf16.msra.mxu0 0
        %1499 = vmatprep.subr.bf16.mxu0 0
        %1500 = vmatpush2.bf16.msra.mxu0 0
        %1501 = vmatprep.mubr.bf16.mxu0 0
        %1502 = vmatmul.mubr.bf16.gmra.mxu0 %v1464
        %v1503 = vpop.f32.mrf.mxu0
        %v1504 = vadd.f32 0.0, %v1503
        %v1505 = vpop.f32.mrf.mxu0
        %v1506 = vpop.f32.mrf.mxu0
        %v1507 = vpop.f32.mrf.mxu0
        %1508 = vdwg.mxu0
        %v1510 = vsel %vm1167, %v1414, 0
        %v1513 = vsel %vm1419, %v1165, 0
        %1515 = vmatprep.subr.bf16.mxu0 0
        %1516 = vmatpush1.bf16.msra.mxu0 0
        %1517 = vmatprep.subr.bf16.mxu0 0
        %1518 = vmatpush1.bf16.msra.mxu0 0
        %1519 = vmatprep.subr.bf16.mxu0 0
        %1520 = vmatpush1.bf16.msra.mxu0 0
        %1521 = vmatprep.subr.bf16.mxu0 0
        %1522 = vmatpush1.bf16.msra.mxu0 0
        %1523 = vmatprep.subr.bf16.mxu0 0
        %1524 = vmatpush1.bf16.msra.mxu0 0
        %1525 = vmatprep.subr.bf16.mxu0 0
        %1526 = vmatpush1.bf16.msra.mxu0 0
        %1527 = vmatprep.subr.bf16.mxu0 0
        %1528 = vmatpush1.bf16.msra.mxu0 0
        %1529 = vmatprep.subr.bf16.mxu0 0
        %1530 = vmatpush1.bf16.msra.mxu0 %v1513
        %1531 = vmatprep.subr.bf16.mxu0 0
        %1532 = vmatpush2.bf16.msra.mxu0 0
        %1533 = vmatprep.subr.bf16.mxu0 0
        %1534 = vmatpush2.bf16.msra.mxu0 0
        %1535 = vmatprep.subr.bf16.mxu0 0
        %1536 = vmatpush2.bf16.msra.mxu0 0
        %1537 = vmatprep.subr.bf16.mxu0 0
        %1538 = vmatpush2.bf16.msra.mxu0 0
        %1539 = vmatprep.subr.bf16.mxu0 0
        %1540 = vmatpush2.bf16.msra.mxu0 0
        %1541 = vmatprep.subr.bf16.mxu0 0
        %1542 = vmatpush2.bf16.msra.mxu0 0
        %1543 = vmatprep.subr.bf16.mxu0 0
        %1544 = vmatpush2.bf16.msra.mxu0 0
        %1545 = vmatprep.subr.bf16.mxu0 0
        %1546 = vmatpush2.bf16.msra.mxu0 0
        %1547 = vmatprep.mubr.bf16.mxu0 0
        %1548 = vmatmul.mubr.bf16.gmra.mxu0 %v1510
        %v1549 = vpop.f32.mrf.mxu0
        %v1550 = vadd.f32 0.0, %v1549
        %v1551 = vpop.f32.mrf.mxu0
        %v1552 = vpop.f32.mrf.mxu0
        %v1553 = vpop.f32.mrf.mxu0
        %1554 = vdwg.mxu0
        %v1556 = vsel %vm1167, %v1415, 0
        %v1559 = vsel %vm1419, %v1166, 0
        %1561 = vmatprep.subr.bf16.mxu0 0
        %1562 = vmatpush1.bf16.msra.mxu0 0
        %1563 = vmatprep.subr.bf16.mxu0 0
        %1564 = vmatpush1.bf16.msra.mxu0 0
        %1565 = vmatprep.subr.bf16.mxu0 0
        %1566 = vmatpush1.bf16.msra.mxu0 0
        %1567 = vmatprep.subr.bf16.mxu0 0
        %1568 = vmatpush1.bf16.msra.mxu0 0
        %1569 = vmatprep.subr.bf16.mxu0 0
        %1570 = vmatpush1.bf16.msra.mxu0 0
        %1571 = vmatprep.subr.bf16.mxu0 0
        %1572 = vmatpush1.bf16.msra.mxu0 0
        %1573 = vmatprep.subr.bf16.mxu0 0
        %1574 = vmatpush1.bf16.msra.mxu0 0
        %1575 = vmatprep.subr.bf16.mxu0 0
        %1576 = vmatpush1.bf16.msra.mxu0 %v1559
        %1577 = vmatprep.subr.bf16.mxu0 0
        %1578 = vmatpush2.bf16.msra.mxu0 0
        %1579 = vmatprep.subr.bf16.mxu0 0
        %1580 = vmatpush2.bf16.msra.mxu0 0
        %1581 = vmatprep.subr.bf16.mxu0 0
        %1582 = vmatpush2.bf16.msra.mxu0 0
        %1583 = vmatprep.subr.bf16.mxu0 0
        %1584 = vmatpush2.bf16.msra.mxu0 0
        %1585 = vmatprep.subr.bf16.mxu0 0
        %1586 = vmatpush2.bf16.msra.mxu0 0
        %1587 = vmatprep.subr.bf16.mxu0 0
        %1588 = vmatpush2.bf16.msra.mxu0 0
        %1589 = vmatprep.subr.bf16.mxu0 0
        %1590 = vmatpush2.bf16.msra.mxu0 0
        %1591 = vmatprep.subr.bf16.mxu0 0
        %1592 = vmatpush2.bf16.msra.mxu0 0
        %1593 = vmatprep.mubr.bf16.mxu0 0
        %1594 = vmatmul.mubr.bf16.gmra.mxu0 %v1556
        %v1595 = vpop.f32.mrf.mxu0
        %v1596 = vadd.f32 0.0, %v1595
        %v1597 = vpop.f32.mrf.mxu0
        %v1598 = vpop.f32.mrf.mxu0
        %v1599 = vpop.f32.mrf.mxu0
        %1600 = vdwg.mxu0
        %v1601 = vpack.c.bf16 %v1458, %v1458
        %v1602 = vpack.c.bf16 %v1504, %v1504
        %v1603 = vpack.c.bf16 %v1550, %v1550
        %v1604 = vpack.c.bf16 %v1596, %v1596
        %v1605 = vld [vmem:[%s4] sm:$0xf]
        %v1606 = vld [vmem:[%s4 + $0x4] sm:$0xf]
        %v1607 = vld [vmem:[%s4 + $0x8] sm:$0xf]
        %v1608 = vld [vmem:[%s4 + $0xc] sm:$0xf]
        %v1610 = vsel %vm1167, %v1601, 0
        %v1613 = vsel %vm1419, %v1605, 0
        %1615 = vmatprep.subr.bf16.mxu0 0
        %1616 = vmatpush1.bf16.msra.mxu0 0
        %1617 = vmatprep.subr.bf16.mxu0 0
        %1618 = vmatpush1.bf16.msra.mxu0 0
        %1619 = vmatprep.subr.bf16.mxu0 0
        %1620 = vmatpush1.bf16.msra.mxu0 0
        %1621 = vmatprep.subr.bf16.mxu0 0
        %1622 = vmatpush1.bf16.msra.mxu0 0
        %1623 = vmatprep.subr.bf16.mxu0 0
        %1624 = vmatpush1.bf16.msra.mxu0 0
        %1625 = vmatprep.subr.bf16.mxu0 0
        %1626 = vmatpush1.bf16.msra.mxu0 0
        %1627 = vmatprep.subr.bf16.mxu0 0
        %1628 = vmatpush1.bf16.msra.mxu0 0
        %1629 = vmatprep.subr.bf16.mxu0 0
        %1630 = vmatpush1.bf16.msra.mxu0 %v1613
        %1631 = vmatprep.subr.bf16.mxu0 0
        %1632 = vmatpush2.bf16.msra.mxu0 0
        %1633 = vmatprep.subr.bf16.mxu0 0
        %1634 = vmatpush2.bf16.msra.mxu0 0
        %1635 = vmatprep.subr.bf16.mxu0 0
        %1636 = vmatpush2.bf16.msra.mxu0 0
        %1637 = vmatprep.subr.bf16.mxu0 0
        %1638 = vmatpush2.bf16.msra.mxu0 0
        %1639 = vmatprep.subr.bf16.mxu0 0
        %1640 = vmatpush2.bf16.msra.mxu0 0
        %1641 = vmatprep.subr.bf16.mxu0 0
        %1642 = vmatpush2.bf16.msra.mxu0 0
        %1643 = vmatprep.subr.bf16.mxu0 0
        %1644 = vmatpush2.bf16.msra.mxu0 0
        %1645 = vmatprep.subr.bf16.mxu0 0
        %1646 = vmatpush2.bf16.msra.mxu0 0
        %1647 = vmatprep.mubr.bf16.mxu0 0
        %1648 = vmatmul.mubr.bf16.gmra.mxu0 %v1610
        %v1649 = vpop.f32.mrf.mxu0
        %v1650 = vadd.f32 0.0, %v1649
        %v1651 = vpop.f32.mrf.mxu0
        %v1652 = vpop.f32.mrf.mxu0
        %v1653 = vpop.f32.mrf.mxu0
        %1654 = vdwg.mxu0
        %v1656 = vsel %vm1167, %v1602, 0
        %v1659 = vsel %vm1419, %v1606, 0
        %1661 = vmatprep.subr.bf16.mxu0 0
        %1662 = vmatpush1.bf16.msra.mxu0 0
        %1663 = vmatprep.subr.bf16.mxu0 0
        %1664 = vmatpush1.bf16.msra.mxu0 0
        %1665 = vmatprep.subr.bf16.mxu0 0
        %1666 = vmatpush1.bf16.msra.mxu0 0
        %1667 = vmatprep.subr.bf16.mxu0 0
        %1668 = vmatpush1.bf16.msra.mxu0 0
        %1669 = vmatprep.subr.bf16.mxu0 0
        %1670 = vmatpush1.bf16.msra.mxu0 0
        %1671 = vmatprep.subr.bf16.mxu0 0
        %1672 = vmatpush1.bf16.msra.mxu0 0
        %1673 = vmatprep.subr.bf16.mxu0 0
        %1674 = vmatpush1.bf16.msra.mxu0 0
        %1675 = vmatprep.subr.bf16.mxu0 0
        %1676 = vmatpush1.bf16.msra.mxu0 %v1659
        %1677 = vmatprep.subr.bf16.mxu0 0
        %1678 = vmatpush2.bf16.msra.mxu0 0
        %1679 = vmatprep.subr.bf16.mxu0 0
        %1680 = vmatpush2.bf16.msra.mxu0 0
        %1681 = vmatprep.subr.bf16.mxu0 0
        %1682 = vmatpush2.bf16.msra.mxu0 0
        %1683 = vmatprep.subr.bf16.mxu0 0
        %1684 = vmatpush2.bf16.msra.mxu0 0
        %1685 = vmatprep.subr.bf16.mxu0 0
        %1686 = vmatpush2.bf16.msra.mxu0 0
        %1687 = vmatprep.subr.bf16.mxu0 0
        %1688 = vmatpush2.bf16.msra.mxu0 0
        %1689 = vmatprep.subr.bf16.mxu0 0
        %1690 = vmatpush2.bf16.msra.mxu0 0
        %1691 = vmatprep.subr.bf16.mxu0 0
        %1692 = vmatpush2.bf16.msra.mxu0 0
        %1693 = vmatprep.mubr.bf16.mxu0 0
        %1694 = vmatmul.mubr.bf16.gmra.mxu0 %v1656
        %v1695 = vpop.f32.mrf.mxu0
        %v1696 = vadd.f32 0.0, %v1695
        %v1697 = vpop.f32.mrf.mxu0
        %v1698 = vpop.f32.mrf.mxu0
        %v1699 = vpop.f32.mrf.mxu0
        %1700 = vdwg.mxu0
        %v1702 = vsel %vm1167, %v1603, 0
        %v1705 = vsel %vm1419, %v1607, 0
        %1707 = vmatprep.subr.bf16.mxu0 0
        %1708 = vmatpush1.bf16.msra.mxu0 0
        %1709 = vmatprep.subr.bf16.mxu0 0
        %1710 = vmatpush1.bf16.msra.mxu0 0
        %1711 = vmatprep.subr.bf16.mxu0 0
        %1712 = vmatpush1.bf16.msra.mxu0 0
        %1713 = vmatprep.subr.bf16.mxu0 0
        %1714 = vmatpush1.bf16.msra.mxu0 0
        %1715 = vmatprep.subr.bf16.mxu0 0
        %1716 = vmatpush1.bf16.msra.mxu0 0
        %1717 = vmatprep.subr.bf16.mxu0 0
        %1718 = vmatpush1.bf16.msra.mxu0 0
        %1719 = vmatprep.subr.bf16.mxu0 0
        %1720 = vmatpush1.bf16.msra.mxu0 0
        %1721 = vmatprep.subr.bf16.mxu0 0
        %1722 = vmatpush1.bf16.msra.mxu0 %v1705
        %1723 = vmatprep.subr.bf16.mxu0 0
        %1724 = vmatpush2.bf16.msra.mxu0 0
        %1725 = vmatprep.subr.bf16.mxu0 0
        %1726 = vmatpush2.bf16.msra.mxu0 0
        %1727 = vmatprep.subr.bf16.mxu0 0
        %1728 = vmatpush2.bf16.msra.mxu0 0
        %1729 = vmatprep.subr.bf16.mxu0 0
        %1730 = vmatpush2.bf16.msra.mxu0 0
        %1731 = vmatprep.subr.bf16.mxu0 0
        %1732 = vmatpush2.bf16.msra.mxu0 0
        %1733 = vmatprep.subr.bf16.mxu0 0
        %1734 = vmatpush2.bf16.msra.mxu0 0
        %1735 = vmatprep.subr.bf16.mxu0 0
        %1736 = vmatpush2.bf16.msra.mxu0 0
        %1737 = vmatprep.subr.bf16.mxu0 0
        %1738 = vmatpush2.bf16.msra.mxu0 0
        %1739 = vmatprep.mubr.bf16.mxu0 0
        %1740 = vmatmul.mubr.bf16.gmra.mxu0 %v1702
        %v1741 = vpop.f32.mrf.mxu0
        %v1742 = vadd.f32 0.0, %v1741
        %v1743 = vpop.f32.mrf.mxu0
        %v1744 = vpop.f32.mrf.mxu0
        %v1745 = vpop.f32.mrf.mxu0
        %1746 = vdwg.mxu0
        %v1748 = vsel %vm1167, %v1604, 0
        %v1751 = vsel %vm1419, %v1608, 0
        %1753 = vmatprep.subr.bf16.mxu0 0
        %1754 = vmatpush1.bf16.msra.mxu0 0
        %1755 = vmatprep.subr.bf16.mxu0 0
        %1756 = vmatpush1.bf16.msra.mxu0 0
        %1757 = vmatprep.subr.bf16.mxu0 0
        %1758 = vmatpush1.bf16.msra.mxu0 0
        %1759 = vmatprep.subr.bf16.mxu0 0
        %1760 = vmatpush1.bf16.msra.mxu0 0
        %1761 = vmatprep.subr.bf16.mxu0 0
        %1762 = vmatpush1.bf16.msra.mxu0 0
        %1763 = vmatprep.subr.bf16.mxu0 0
        %1764 = vmatpush1.bf16.msra.mxu0 0
        %1765 = vmatprep.subr.bf16.mxu0 0
        %1766 = vmatpush1.bf16.msra.mxu0 0
        %1767 = vmatprep.subr.bf16.mxu0 0
        %1768 = vmatpush1.bf16.msra.mxu0 %v1751
        %1769 = vmatprep.subr.bf16.mxu0 0
        %1770 = vmatpush2.bf16.msra.mxu0 0
        %1771 = vmatprep.subr.bf16.mxu0 0
        %1772 = vmatpush2.bf16.msra.mxu0 0
        %1773 = vmatprep.subr.bf16.mxu0 0
        %1774 = vmatpush2.bf16.msra.mxu0 0
        %1775 = vmatprep.subr.bf16.mxu0 0
        %1776 = vmatpush2.bf16.msra.mxu0 0
        %1777 = vmatprep.subr.bf16.mxu0 0
        %1778 = vmatpush2.bf16.msra.mxu0 0
        %1779 = vmatprep.subr.bf16.mxu0 0
        %1780 = vmatpush2.bf16.msra.mxu0 0
        %1781 = vmatprep.subr.bf16.mxu0 0
        %1782 = vmatpush2.bf16.msra.mxu0 0
        %1783 = vmatprep.subr.bf16.mxu0 0
        %1784 = vmatpush2.bf16.msra.mxu0 0
        %1785 = vmatprep.mubr.bf16.mxu0 0
        %1786 = vmatmul.mubr.bf16.gmra.mxu0 %v1748
        %v1787 = vpop.f32.mrf.mxu0
        %v1788 = vadd.f32 0.0, %v1787
        %v1789 = vpop.f32.mrf.mxu0
        %v1790 = vpop.f32.mrf.mxu0
        %v1791 = vpop.f32.mrf.mxu0
        %1792 = vdwg.mxu0
        %v1793 = vsel %vm533, %v1650, 0.0
        %v1794 = vsel %vm533, %v1696, 0.0
        %v1795 = vadd.f32 %v1793, %v1794
        %v1796 = vsel %vm533, %v1742, 0.0
        %v1797 = vadd.f32 %v1795, %v1796
        %v1798 = vsel %vm533, %v1788, 0.0
        %v1799 = vadd.f32 %v1797, %v1798
        %v1800 = vld [vmem:[%s5] sm:$0x1]
        %v1802 = vlaneseq
        %v1803 = vshrl.u32 %v1802, 7
        %v1804 = vsub.s32 0, %v1803
        %v1805 = vrot.slane %v1800, %v1804
        %v1807 = vadd.f32 %v1799, %v1805
        %v1808 = vadd.f32 %v1807, %v383
        %1809 = vst.msk [vmem:[%s363] sm:$0xff] %vm533, %v1808
        %s1810 = sand.u32 %s170, 1
        %s1811 = scalar_lea.sflag [#allocation4], %s1810
        %s1812 = sand.u32 %s170, 1
        %s1813 = smul.addr %s1812, 8
        %s1814 = scalar_lea.vmem [#allocation3], %s1813
        %s1815 = sand.u32 %s26, 1
        %s1816 = scalar_lea.sflag [#allocation6], %s1815
        %s1817 = sand.u32 %s196, 1
        %s1818 = smul.addr %s1817, 32
        %s1819 = scalar_lea.vmem [#allocation5], %s1818
        %s1820 = sand.u32 %s26, 1
        %s1821 = scalar_lea.sflag [#allocation6], %s1820
        %s1822 = sand.u32 %s222, 1
        %s1823 = smul.addr %s1822, 32
        %s1824 = scalar_lea.vmem [#allocation7], %s1823
        // Predicated region
        $region83: #{tpu_custom_call.1} parent=77 // pred_check
          %p1825 = pneg %p180
        $region84: #{tpu_custom_call.1} parent=77 // pred_check_branch
          %1827 = sbr.rel (%p1825) target = $region86
        $region85: #{tpu_custom_call.1} parent=77 // pred_region
          %s1829 = ssub.s32 128, 128
          %1830 = vsyncadd %s1811, %s1829
          %s1831 = smul.addr %s26, 128
          %s1832 = scalar_lea.hbm %s6, %s1831
          %s1834 = sshll.u32 %s1814, 4
          %s1835 = int_to_ptr.vmem [resolvable:$true] %s1834
          %1837 = dma.vmem_to_hbm [thread:$0]  %s1835, 128, %s1832, %s1811
        $region86: #{tpu_custom_call.1} parent=77 // pred_fallthru
          _
        // Predicated region
        $region87: #{tpu_custom_call.1} parent=77 // pred_check
          %p1838 = pneg %p206
        $region88: #{tpu_custom_call.1} parent=77 // pred_check_branch
          %1840 = sbr.rel (%p1838) target = $region90
        $region89: #{tpu_custom_call.1} parent=77 // pred_region
          %s1842 = ssub.s32 512, 512
          %1843 = vsyncadd %s1816, %s1842
          %s1844 = smul.addr %s26, 4
          %s1845 = smul.addr %s1844, 128
          %s1846 = scalar_lea.hbm %s7, %s1845
          %s1847 = sshll.u32 %s1819, 4
          %s1848 = int_to_ptr.vmem [resolvable:$true] %s1847
          %1853 = dma.vmem_to_hbm [thread:$0]  %s1848, 512, %s1846, %s1816, 128, 128, 8
        $region90: #{tpu_custom_call.1} parent=77 // pred_fallthru
          _
        // Predicated region
        $region91: #{tpu_custom_call.1} parent=77 // pred_check
          %p1854 = pneg %p232
        $region92: #{tpu_custom_call.1} parent=77 // pred_check_branch
          %1856 = sbr.rel (%p1854) target = $region94
        $region93: #{tpu_custom_call.1} parent=77 // pred_region
          %s1858 = ssub.s32 512, 512
          %1859 = vsyncadd %s1821, %s1858
          %s1860 = smul.addr %s26, 4
          %s1861 = smul.addr %s1860, 128
          %s1862 = scalar_lea.hbm %s8, %s1861
          %s1863 = sshll.u32 %s1824, 4
          %s1864 = int_to_ptr.vmem [resolvable:$true] %s1863
          %1869 = dma.vmem_to_hbm [thread:$0]  %s1864, 512, %s1862, %s1821, 128, 128, 8
        $region94: #{tpu_custom_call.1} parent=77 // pred_fallthru
          _
      $region78: #{tpu_custom_call.1} parent=5 // pred_fallthru
        _
      %p1870 = scmp.le.s32.totalorder 2, %s21
      // Predicated region
      $region95: #{tpu_custom_call.1} parent=5 // pred_check
        %p1871 = pneg %p1870
      $region96: #{tpu_custom_call.1} parent=5 // pred_check_branch
        %1873 = sbr.rel (%p1871) target = $region98
      $region97: #{tpu_custom_call.1} parent=5 // pred_region
        %s1874 = ssub.s32 %s21, 2
        // Predicated region
        $region99: #{tpu_custom_call.1} parent=97 // pred_check
          %p1875 = pneg %p186
        $region100: #{tpu_custom_call.1} parent=97 // pred_check_branch
          %1877 = sbr.rel (%p1875) target = $region102
        $region101: #{tpu_custom_call.1} parent=97 // pred_region
          %s1878 = sand.u32 %s171, 1
          %s1879 = scalar_lea.sflag [#allocation4], %s1878
          %s1880 = sand.u32 %s171, 1
          %s1881 = smul.addr %s1880, 8
          %s1882 = scalar_lea.vmem [#allocation3], %s1881
          %1883 = dma.done %s1879, 128
        $region102: #{tpu_custom_call.1} parent=97 // pred_fallthru
          _
        // Predicated region
        $region103: #{tpu_custom_call.1} parent=97 // pred_check
          %p1884 = pneg %p212
        $region104: #{tpu_custom_call.1} parent=97 // pred_check_branch
          %1886 = sbr.rel (%p1884) target = $region106
        $region105: #{tpu_custom_call.1} parent=97 // pred_region
          %s1887 = sand.u32 %s27, 1
          %s1888 = scalar_lea.sflag [#allocation6], %s1887
          %s1889 = sand.u32 %s197, 1
          %s1890 = smul.addr %s1889, 32
          %s1891 = scalar_lea.vmem [#allocation5], %s1890
          %1892 = dma.done %s1888, 512
        $region106: #{tpu_custom_call.1} parent=97 // pred_fallthru
          _
        // Predicated region
        $region107: #{tpu_custom_call.1} parent=97 // pred_check
          %p1893 = pneg %p238
        $region108: #{tpu_custom_call.1} parent=97 // pred_check_branch
          %1895 = sbr.rel (%p1893) target = $region110
        $region109: #{tpu_custom_call.1} parent=97 // pred_region
          %s1896 = sand.u32 %s27, 1
          %s1897 = scalar_lea.sflag [#allocation6], %s1896
          %s1898 = sand.u32 %s223, 1
          %s1899 = smul.addr %s1898, 32
          %s1900 = scalar_lea.vmem [#allocation7], %s1899
          %1901 = dma.done %s1897, 512
        $region110: #{tpu_custom_call.1} parent=97 // pred_fallthru
          _
      $region98: #{tpu_custom_call.1} parent=5 // pred_fallthru
        _
    $region6: #{tpu_custom_call.1} parent=1 // loop_footer
      %s25 = sadd.s32 1, %s21
    $region7: #{tpu_custom_call.1} parent=1 // loop_footer_branch
      %20 = sbr.rel target = $region3
    $region8: #{tpu_custom_call.1} parent=1 // loop_exit
      _
    %1902 = vsyncpa [#allocation4], 1
    %s1903 = scalar_lea.sflag [#allocation4], 1
    %1904 = vsyncpa %s1903, 1
    %1905 = vsyncpa [#allocation6], 1
    %s1906 = scalar_lea.sflag [#allocation6], 1
    %1907 = vsyncpa %s1906, 1

</llo_original>
